<compile_context>
chip_gen: v5e
topology: v5e:2x2
jax: 0.10.0
libtpu: 0.0.40
codegen_flags: <defaults>
</compile_context>

<pallas_src>
import jax
import jax.numpy as jnp
from jax.experimental import pallas as pl
from jax.experimental.pallas import tpu as pltpu

NEG_SLOPE = 0.01   # torch.nn.LeakyReLU default negative_slope
_LANE = 128        # TPU lane width


def _leaky_relu(x):
    # max-form: mul + max (2 VPU ops) instead of cmp + select + mul (3).
    return jnp.maximum(x, NEG_SLOPE * x)


def _round_up(n, m):
    return ((n + m - 1) // m) * m


def _tensorcores_per_chip():
    """Best-effort TensorCores-per-device from the device kind string."""
    try:
        kind = jax.devices()[0].device_kind.lower()
    except Exception:
        return 1
    if "v7" in kind:                       # v7x: 2 TCs per chip
        return 2
    if "v4" in kind or "v5p" in kind:      # megacore chips
        return 2
    return 1                               # v5e / v6e: single TC


def dnn_kernel(xt_ref,
               w0_ref,
               w1_ref, b1_ref,
               w2_ref, b2_ref,
               w3_ref, b3_ref,
               o_ref):
    """Fused 4-layer MLP on one batch tile, feature-major.

    Shapes per grid step (P* = hidden dims padded to 128, TB = batch tile):
      xt_ref : (F+1, TB) bf16  -- batch on lanes; last row is ones (bias fold)
      w0_ref : (P0, F+1) bf16  -- b0 folded in as the last column
      w1_ref : (P1, P0)  bf16     b1_ref : (P1, 1) f32
      w2_ref : (P2, P1)  bf16     b2_ref : (P2, 1) f32
      w3_ref : (1,  P2)  bf16     b3_ref : (1, 1)  f32 (SMEM)
      o_ref  : (1,  TB)  f32   -- lane-dense output block
    """
    # Layer 0: bias folded into the contraction (K = F+1), f32 accumulation.
    h = jnp.dot(w0_ref[...], xt_ref[...], preferred_element_type=jnp.float32)
    h = _leaky_relu(h)

    # Layer 1.
    h = jnp.dot(w1_ref[...], h.astype(jnp.bfloat16),
                preferred_element_type=jnp.float32) + b1_ref[...]
    h = _leaky_relu(h)

    # Layer 2.
    h = jnp.dot(w2_ref[...], h.astype(jnp.bfloat16),
                preferred_element_type=jnp.float32) + b2_ref[...]
    h = _leaky_relu(h)

    # Layer 3 (P2 -> 1) on the otherwise-idle MXU; result is lane-dense (1,TB).
    out = jnp.dot(w3_ref[...], h.astype(jnp.bfloat16),
                  preferred_element_type=jnp.float32) + b3_ref[0, 0]
    o_ref[...] = out.astype(o_ref.dtype)


def _pick_batch_tile(batch, num_cores, max_tile):
    """One lane-dense tile per TensorCore (capped at max_tile):
    single-TC chips get one grid step, dual-TC chips get exactly two."""
    per_core = pl.cdiv(batch, num_cores)
    tb = _round_up(per_core, _LANE)
    tb = min(tb, _round_up(max_tile, _LANE))
    return max(tb, _LANE)


def pack_params(params):
    """One-time packing of PyTorch-convention params (w: (out,in), b: (out,)):
    128-pad hidden dims, fold b0 into w0, cast matmul operands to bf16."""
    f_in = params["w0"].shape[1]
    h0, h1, h2 = (params[f"w{i}"].shape[0] for i in range(3))
    p0, p1, p2 = (_round_up(d, _LANE) for d in (h0, h1, h2))

    def pad2(a, rows, cols):
        return jnp.pad(a, ((0, rows - a.shape[0]), (0, cols - a.shape[1])))

    w0_aug = jnp.concatenate([params["w0"], params["b0"][:, None]], axis=1)
    return {
        "w0": pad2(w0_aug, p0, f_in + 1).astype(jnp.bfloat16),   # (P0, F+1)
        "w1": pad2(params["w1"], p1, p0).astype(jnp.bfloat16),
        "b1": pad2(params["b1"][:, None], p1, 1).astype(jnp.float32),
        "w2": pad2(params["w2"], p2, p1).astype(jnp.bfloat16),
        "b2": pad2(params["b2"][:, None], p2, 1).astype(jnp.float32),
        "w3": pad2(params["w3"], 1, p2).astype(jnp.bfloat16),    # (1, P2)
        "b3": params["b3"].reshape(1, 1).astype(jnp.float32),
    }


def dnn_forward(x, packed, *, max_batch_tile=4096):
    """x: (B, F) float32.  packed: output of pack_params().  -> (B, 1) f32."""
    B, F = x.shape
    p0 = packed["w1"].shape[1]
    p1 = packed["w2"].shape[1]
    p2 = packed["w3"].shape[1]
    assert packed["w0"].shape == (p0, F + 1)

    num_cores = _tensorcores_per_chip()
    tb = _pick_batch_tile(B, num_cores, max_batch_tile)
    b_pad = _round_up(B, tb)
    num_tiles = b_pad // tb

    # Per-call layout plumbing only: feature-major x with a ones row (layer-0
    # bias fold), zero-padded to the tile boundary. Everything else is packed
    # once in pack_params().
    xt = jnp.concatenate([x.T, jnp.ones((1, B), x.dtype)], axis=0)
    xt = jnp.pad(xt.astype(jnp.bfloat16), ((0, 0), (0, b_pad - B)))

    flops = int(2 * b_pad * ((F + 1) * p0 + p0 * p1 + p1 * p2 + p2))
    bytes_accessed = int(
        xt.size * xt.dtype.itemsize + b_pad * 4
        + sum(a.size * a.dtype.itemsize for a in packed.values()))

    def resident(a):
        # Grid-invariant parameter block: resident in VMEM, single-buffered.
        return pl.BlockSpec(a.shape, lambda i: (0, 0),
                            pipeline_mode=pl.Buffered(1))

    out = pl.pallas_call(
        dnn_kernel,
        out_shape=jax.ShapeDtypeStruct((1, b_pad), jnp.float32),
        grid_spec=pltpu.PrefetchScalarGridSpec(
            num_scalar_prefetch=0,
            grid=(num_tiles,),
            in_specs=[
                pl.BlockSpec((F + 1, tb), lambda i: (0, i)),        # x tile
                resident(packed["w0"]),
                resident(packed["w1"]), resident(packed["b1"]),
                resident(packed["w2"]), resident(packed["b2"]),
                resident(packed["w3"]),
                pl.BlockSpec(memory_space=pltpu.MemorySpace.SMEM),  # b3 scalar
            ],
            out_specs=pl.BlockSpec((1, tb), lambda i: (0, i)),
        ),
        compiler_params=pltpu.CompilerParams(
            dimension_semantics=("parallel",)),
        cost_estimate=pl.CostEstimate(
            flops=flops, transcendentals=0, bytes_accessed=bytes_accessed),
    )(xt, packed["w0"],
      packed["w1"], packed["b1"],
      packed["w2"], packed["b2"],
      packed["w3"], packed["b3"])

    # (1, b_pad) row-major is b_pad contiguous scalars -> reshape is free.
    return out.reshape(b_pad, 1)[:B]


def init_params(key, input_features, h0, h1, h2, out_class):
    """PyTorch-convention params (w: (out, in), b: (out,)) with nn.Linear's
    default uniform fan-in init."""
    dims = [(h0, input_features), (h1, h0), (h2, h1), (out_class, h2)]
    params = {}
    for idx, (fan_out, fan_in) in enumerate(dims):
        key, kw, kb = jax.random.split(key, 3)
        bound = float(fan_in) ** -0.5
        params[f"w{idx}"] = jax.random.uniform(
            kw, (fan_out, fan_in), jnp.float32, -bound, bound)
        params[f"b{idx}"] = jax.random.uniform(
            kb, (fan_out,), jnp.float32, -bound, bound)
    return params


def dnn_reference(x, params):
    """Pure-JAX reference mirroring the kernel numerics (bf16 matmul operands,
    f32 accumulation, layer-0 bias folded into the contraction)."""
    ones = jnp.ones((x.shape[0], 1), x.dtype)
    xa = jnp.concatenate([x, ones], axis=1).astype(jnp.bfloat16)
    w0a = jnp.concatenate([params["w0"], params["b0"][:, None]],
                          axis=1).astype(jnp.bfloat16)
    h = jnp.dot(xa, w0a.T, preferred_element_type=jnp.float32)
    h = jnp.maximum(h, NEG_SLOPE * h)
    for idx in (1, 2):
        w = params[f"w{idx}"].astype(jnp.bfloat16)
        h = (jnp.dot(h.astype(jnp.bfloat16), w.T,
                     preferred_element_type=jnp.float32) + params[f"b{idx}"])
        h = jnp.maximum(h, NEG_SLOPE * h)
    w3 = params["w3"].astype(jnp.bfloat16)
    return (jnp.dot(h.astype(jnp.bfloat16), w3.T,
                    preferred_element_type=jnp.float32) + params["b3"])


if __name__ == "__main__":
    # Shapes consistent with Kfoldvalidate.py's DNNNet: 16 input features,
    # hidden layers 70/68/53, one output; batch 484 = 2420 - int(2420 * 0.8)
    # (the held-out split).  Single-TC chips -> TB=512, grid=(1,);
    # dual-TC chips -> TB=256, grid=(2,).
    BATCH = 484
    INPUT_FEATURES = 16
    HIDDEN0, HIDDEN1, HIDDEN2 = 70, 68, 53
    OUTPUT_CLASS = 1

    key = jax.random.PRNGKey(0)
    key, kx = jax.random.split(key)
    x = jax.random.normal(kx, (BATCH, INPUT_FEATURES), jnp.float32)
    params = init_params(key, INPUT_FEATURES, HIDDEN0, HIDDEN1, HIDDEN2,
                         OUTPUT_CLASS)

    packed = pack_params(params)          # one-time packing, out of hot path
    fwd = jax.jit(dnn_forward)

    out = jax.block_until_ready(fwd(x, packed))
    ref = dnn_reference(x, params)

    assert out.shape == (BATCH, OUTPUT_CLASS), out.shape
    max_err = float(jnp.max(jnp.abs(out - ref)))
    assert jnp.allclose(out, ref, atol=1e-3, rtol=1e-3), (
        f"Pallas output does not match reference (max abs err {max_err:.3e})")

    print("KERNEL_OK")
</pallas_src>

<mosaic_0001>
module attributes {stable_mosaic.version = 11 : i64} {
  func.func @dnn_kernel(%arg0: i32, %arg1: memref<17x512xbf16, #tpu.memory_space<vmem>>, %arg2: memref<128x17xbf16, #tpu.memory_space<vmem>>, %arg3: memref<128x128xbf16, #tpu.memory_space<vmem>>, %arg4: memref<128x1xf32, #tpu.memory_space<vmem>>, %arg5: memref<128x128xbf16, #tpu.memory_space<vmem>>, %arg6: memref<128x1xf32, #tpu.memory_space<vmem>>, %arg7: memref<1x128xbf16, #tpu.memory_space<vmem>>, %arg8: memref<1x1xf32, #tpu.memory_space<smem>>, %arg9: memref<1x512xf32, #tpu.memory_space<vmem>>) attributes {dimension_semantics = [#tpu.dimension_semantics<parallel>], iteration_bounds = array<i64: 1>, scalar_prefetch = 0 : i64, scratch_operands = 0 : i64, tpu.core_type = #tpu.core_type<tc>, window_params = [{transform_indices = @transform_0, window_bounds = array<i64: 17, 512>}, {pipeline_mode = #tpu.pipeline_mode<synchronous>, transform_indices = @transform_1, window_bounds = array<i64: 128, 17>}, {pipeline_mode = #tpu.pipeline_mode<synchronous>, transform_indices = @transform_2, window_bounds = array<i64: 128, 128>}, {pipeline_mode = #tpu.pipeline_mode<synchronous>, transform_indices = @transform_3, window_bounds = array<i64: 128, 1>}, {pipeline_mode = #tpu.pipeline_mode<synchronous>, transform_indices = @transform_4, window_bounds = array<i64: 128, 128>}, {pipeline_mode = #tpu.pipeline_mode<synchronous>, transform_indices = @transform_5, window_bounds = array<i64: 128, 1>}, {pipeline_mode = #tpu.pipeline_mode<synchronous>, transform_indices = @transform_6, window_bounds = array<i64: 1, 128>}, {transform_indices = @transform_7, window_bounds = array<i64: 1, 1>}, {transform_indices = @transform_8, window_bounds = array<i64: 1, 512>}]} {
    %c0 = arith.constant 0 : index
    %c0_0 = arith.constant 0 : index
    %0 = vector.load %arg2[%c0, %c0_0] : memref<128x17xbf16, #tpu.memory_space<vmem>>, vector<128x17xbf16>
    %c0_1 = arith.constant 0 : index
    %c0_2 = arith.constant 0 : index
    %1 = vector.load %arg1[%c0_1, %c0_2] : memref<17x512xbf16, #tpu.memory_space<vmem>>, vector<17x512xbf16>
    %cst = arith.constant dense<0.000000e+00> : vector<128x512xf32>
    %2 = tpu.matmul %0, %1, %cst {dimension_numbers = #tpu.dot_dimension_numbers<[1], [0], [0], [1], [0, 0, 1, 1], [], []>} : vector<128x17xbf16>, vector<17x512xbf16>, vector<128x512xf32> -> vector<128x512xf32>
    %cst_3 = arith.constant 0.00999999977 : f32
    %3 = vector.broadcast %cst_3 : f32 to vector<128x512xf32>
    %4 = arith.mulf %3, %2 : vector<128x512xf32>
    %5 = arith.maximumf %2, %4 : vector<128x512xf32>
    %c0_4 = arith.constant 0 : index
    %c0_5 = arith.constant 0 : index
    %6 = vector.load %arg3[%c0_4, %c0_5] : memref<128x128xbf16, #tpu.memory_space<vmem>>, vector<128x128xbf16>
    %7 = arith.truncf %5 : vector<128x512xf32> to vector<128x512xbf16>
    %cst_6 = arith.constant dense<0.000000e+00> : vector<128x512xf32>
    %8 = tpu.matmul %6, %7, %cst_6 {dimension_numbers = #tpu.dot_dimension_numbers<[1], [0], [0], [1], [0, 0, 1, 1], [], []>} : vector<128x128xbf16>, vector<128x512xbf16>, vector<128x512xf32> -> vector<128x512xf32>
    %c0_7 = arith.constant 0 : index
    %c0_8 = arith.constant 0 : index
    %9 = vector.load %arg4[%c0_7, %c0_8] : memref<128x1xf32, #tpu.memory_space<vmem>>, vector<128x1xf32>
    %10 = vector.broadcast %9 : vector<128x1xf32> to vector<128x512xf32>
    %11 = arith.addf %8, %10 : vector<128x512xf32>
    %cst_9 = arith.constant 0.00999999977 : f32
    %12 = vector.broadcast %cst_9 : f32 to vector<128x512xf32>
    %13 = arith.mulf %12, %11 : vector<128x512xf32>
    %14 = arith.maximumf %11, %13 : vector<128x512xf32>
    %c0_10 = arith.constant 0 : index
    %c0_11 = arith.constant 0 : index
    %15 = vector.load %arg5[%c0_10, %c0_11] : memref<128x128xbf16, #tpu.memory_space<vmem>>, vector<128x128xbf16>
    %16 = arith.truncf %14 : vector<128x512xf32> to vector<128x512xbf16>
    %cst_12 = arith.constant dense<0.000000e+00> : vector<128x512xf32>
    %17 = tpu.matmul %15, %16, %cst_12 {dimension_numbers = #tpu.dot_dimension_numbers<[1], [0], [0], [1], [0, 0, 1, 1], [], []>} : vector<128x128xbf16>, vector<128x512xbf16>, vector<128x512xf32> -> vector<128x512xf32>
    %c0_13 = arith.constant 0 : index
    %c0_14 = arith.constant 0 : index
    %18 = vector.load %arg6[%c0_13, %c0_14] : memref<128x1xf32, #tpu.memory_space<vmem>>, vector<128x1xf32>
    %19 = vector.broadcast %18 : vector<128x1xf32> to vector<128x512xf32>
    %20 = arith.addf %17, %19 : vector<128x512xf32>
    %cst_15 = arith.constant 0.00999999977 : f32
    %21 = vector.broadcast %cst_15 : f32 to vector<128x512xf32>
    %22 = arith.mulf %21, %20 : vector<128x512xf32>
    %23 = arith.maximumf %20, %22 : vector<128x512xf32>
    %c0_16 = arith.constant 0 : index
    %c0_17 = arith.constant 0 : index
    %24 = vector.load %arg7[%c0_16, %c0_17] : memref<1x128xbf16, #tpu.memory_space<vmem>>, vector<1x128xbf16>
    %25 = arith.truncf %23 : vector<128x512xf32> to vector<128x512xbf16>
    %cst_18 = arith.constant dense<0.000000e+00> : vector<1x512xf32>
    %26 = tpu.matmul %24, %25, %cst_18 {dimension_numbers = #tpu.dot_dimension_numbers<[1], [0], [0], [1], [0, 0, 1, 1], [], []>} : vector<1x128xbf16>, vector<128x512xbf16>, vector<1x512xf32> -> vector<1x512xf32>
    %c0_19 = arith.constant 0 : index
    %c0_20 = arith.constant 0 : index
    %27 = memref.load %arg8[%c0_19, %c0_20] : memref<1x1xf32, #tpu.memory_space<smem>>
    %28 = vector.broadcast %27 : f32 to vector<1x512xf32>
    %29 = arith.addf %26, %28 : vector<1x512xf32>
    %c0_21 = arith.constant 0 : index
    %c0_22 = arith.constant 0 : index
    %30 = vector.load %arg9[%c0_21, %c0_22] : memref<1x512xf32, #tpu.memory_space<vmem>>, vector<1x512xf32>
    tpu.vector_store %arg9[%c0_21, %c0_22], %29 {strides = array<i32>} : memref<1x512xf32, #tpu.memory_space<vmem>>, vector<1x512xf32>,
    return
  }
  func.func @transform_0(%arg0: i32) -> (i32, i32) {
    %c0_i32 = arith.constant 0 : i32
    %c0_i32_0 = arith.constant 0 : i32
    return %c0_i32, %arg0 : i32, i32
  }
  func.func @transform_1(%arg0: i32) -> (i32, i32) {
    %c0_i32 = arith.constant 0 : i32
    %c0_i32_0 = arith.constant 0 : i32
    %c0_i32_1 = arith.constant 0 : i32
    return %c0_i32, %c0_i32_0 : i32, i32
  }
  func.func @transform_2(%arg0: i32) -> (i32, i32) {
    %c0_i32 = arith.constant 0 : i32
    %c0_i32_0 = arith.constant 0 : i32
    %c0_i32_1 = arith.constant 0 : i32
    return %c0_i32, %c0_i32_0 : i32, i32
  }
  func.func @transform_3(%arg0: i32) -> (i32, i32) {
    %c0_i32 = arith.constant 0 : i32
    %c0_i32_0 = arith.constant 0 : i32
    %c0_i32_1 = arith.constant 0 : i32
    return %c0_i32, %c0_i32_0 : i32, i32
  }
  func.func @transform_4(%arg0: i32) -> (i32, i32) {
    %c0_i32 = arith.constant 0 : i32
    %c0_i32_0 = arith.constant 0 : i32
    %c0_i32_1 = arith.constant 0 : i32
    return %c0_i32, %c0_i32_0 : i32, i32
  }
  func.func @transform_5(%arg0: i32) -> (i32, i32) {
    %c0_i32 = arith.constant 0 : i32
    %c0_i32_0 = arith.constant 0 : i32
    %c0_i32_1 = arith.constant 0 : i32
    return %c0_i32, %c0_i32_0 : i32, i32
  }
  func.func @transform_6(%arg0: i32) -> (i32, i32) {
    %c0_i32 = arith.constant 0 : i32
    %c0_i32_0 = arith.constant 0 : i32
    %c0_i32_1 = arith.constant 0 : i32
    return %c0_i32, %c0_i32_0 : i32, i32
  }
  func.func @transform_7(%arg0: i32) -> (i32, i32) {
    %c0_i32 = arith.constant 0 : i32
    %c0_i32_0 = arith.constant 0 : i32
    %c0_i32_1 = arith.constant 0 : i32
    return %c0_i32, %c0_i32_0 : i32, i32
  }
  func.func @transform_8(%arg0: i32) -> (i32, i32) {
    %c0_i32 = arith.constant 0 : i32
    %c0_i32_0 = arith.constant 0 : i32
    return %c0_i32, %arg0 : i32, i32
  }
}

</mosaic_0001>

<llo_original>
// kernel: dnn_forward.1
$region0: #{dnn_forward.1}
  #allocation0 [shape = 'u32[]', space=smem, size = 0x4, offset = 0x4, fixed_abs, tag = 'smem constant byte address 0x4 - core index']
  #allocation1 [shape = 'u32[72,128]{1,0:T(1,128)}', space=vmem, size = 0x9000, scoped, tag = 'internal scratch']
  #allocation2 [shape = 'f32[1,1]{1,0:T(1,128)S(6)}', space=smem, size = 0x200, scoped, tag = 'scoped memory for dnn_forward.1']
  %s0 = inlined_call_operand.vmem [shape: bf16[17,512], index: 0, kind: input, shape index: {}]
  %s1 = inlined_call_operand.vmem [shape: bf16[128,17], index: 1, kind: input, shape index: {}]
  %s2 = inlined_call_operand.vmem [shape: bf16[128,128], index: 2, kind: input, shape index: {}]
  %s3 = inlined_call_operand.vmem [shape: f32[128,1], index: 3, kind: input, shape index: {}]
  %s4 = inlined_call_operand.vmem [shape: bf16[128,128], index: 4, kind: input, shape index: {}]
  %s5 = inlined_call_operand.vmem [shape: f32[128,1], index: 5, kind: input, shape index: {}]
  %s6 = inlined_call_operand.vmem [shape: bf16[1,128], index: 6, kind: input, shape index: {}]
  %s7 = inlined_call_operand.<no memory space> [shape: f32[1,1], index: 7, kind: input, shape index: {}]
  %s8 = inlined_call_operand.vmem [shape: f32[1,512], index: 8, kind: output, shape index: {}]
  %s9 = sld [smem:[#allocation0]]
  $region42: #{dnn_forward.1} parent=0
    _
  %s11 = ssub.s32 1, %s9
  %s12 = scalar_select 0, %s11, %s9
  %13 = sst [smem:[#allocation2]] %s7
  // Predicated region
  $region2: #{dnn_forward.1} parent=0 // pred_check
    _
  $region3: #{dnn_forward.1} parent=0 // pred_check_branch
    %15 = sbr.rel (0) target = $region5
  $region4: #{dnn_forward.1} parent=0 // pred_region
    _
  $region5: #{dnn_forward.1} parent=0 // pred_fallthru
    _
  // Predicated region
  $region6: #{dnn_forward.1} parent=0 // pred_check
    _
  $region7: #{dnn_forward.1} parent=0 // pred_check_branch
    %17 = sbr.rel (0) target = $region9
  $region8: #{dnn_forward.1} parent=0 // pred_region
    _
  $region9: #{dnn_forward.1} parent=0 // pred_fallthru
    _
  // Predicated region
  $region10: #{dnn_forward.1} parent=0 // pred_check
    _
  $region11: #{dnn_forward.1} parent=0 // pred_check_branch
    %19 = sbr.rel (0) target = $region13
  $region12: #{dnn_forward.1} parent=0 // pred_region
    _
  $region13: #{dnn_forward.1} parent=0 // pred_fallthru
    _
  // Predicated region
  $region14: #{dnn_forward.1} parent=0 // pred_check
    _
  $region15: #{dnn_forward.1} parent=0 // pred_check_branch
    %21 = sbr.rel (0) target = $region17
  $region16: #{dnn_forward.1} parent=0 // pred_region
    _
  $region17: #{dnn_forward.1} parent=0 // pred_fallthru
    _
  // Predicated region
  $region18: #{dnn_forward.1} parent=0 // pred_check
    _
  $region19: #{dnn_forward.1} parent=0 // pred_check_branch
    %23 = sbr.rel (0) target = $region21
  $region20: #{dnn_forward.1} parent=0 // pred_region
    _
  $region21: #{dnn_forward.1} parent=0 // pred_fallthru
    _
  // Predicated region
  $region22: #{dnn_forward.1} parent=0 // pred_check
    _
  $region23: #{dnn_forward.1} parent=0 // pred_check_branch
    %25 = sbr.rel (0) target = $region25
  $region24: #{dnn_forward.1} parent=0 // pred_region
    _
  $region25: #{dnn_forward.1} parent=0 // pred_fallthru
    _
  // Predicated region
  $region26: #{dnn_forward.1} parent=0 // pred_check
    _
  $region27: #{dnn_forward.1} parent=0 // pred_check_branch
    %27 = sbr.rel (0) target = $region29
  $region28: #{dnn_forward.1} parent=0 // pred_region
    _
  $region29: #{dnn_forward.1} parent=0 // pred_fallthru
    _
  // Predicated region
  $region30: #{dnn_forward.1} parent=0 // pred_check
    _
  $region31: #{dnn_forward.1} parent=0 // pred_check_branch
    %29 = sbr.rel (0) target = $region33
  $region32: #{dnn_forward.1} parent=0 // pred_region
    _
  $region33: #{dnn_forward.1} parent=0 // pred_fallthru
    _
  %v31 = vld [vmem:[%s1] sm:$0xf]
  %v32 = vld [vmem:[%s1 + $0x4] sm:$0xf]
  %v33 = vld [vmem:[%s1 + $0x8] sm:$0xf]
  %v34 = vld [vmem:[%s1 + $0xc] sm:$0xf]
  %v35 = vld [vmem:[%s1 + $0x10] sm:$0xf]
  %v36 = vld [vmem:[%s1 + $0x14] sm:$0xf]
  %v37 = vld [vmem:[%s1 + $0x18] sm:$0xf]
  %v38 = vld [vmem:[%s1 + $0x1c] sm:$0xf]
  %v39 = vld [vmem:[%s1 + $0x20] sm:$0xf]
  %v40 = vld [vmem:[%s1 + $0x24] sm:$0xf]
  %v41 = vld [vmem:[%s1 + $0x28] sm:$0xf]
  %v42 = vld [vmem:[%s1 + $0x2c] sm:$0xf]
  %v43 = vld [vmem:[%s1 + $0x30] sm:$0xf]
  %v44 = vld [vmem:[%s1 + $0x34] sm:$0xf]
  %v45 = vld [vmem:[%s1 + $0x38] sm:$0xf]
  %v46 = vld [vmem:[%s1 + $0x3c] sm:$0xf]
  %v47 = vld [vmem:[%s0] sm:$0xff]
  %v48 = vld [vmem:[%s0 + $0x8] sm:$0xff]
  %v49 = vld [vmem:[%s0 + $0x10] sm:$0xff]
  %v50 = vld [vmem:[%s0 + $0x18] sm:$0xff]
  %v51 = vld [vmem:[%s0 + $0x20] sm:$0x11]
  %v52 = vld [vmem:[%s0 + $0x28] sm:$0x11]
  %v69 = vunpack.c.l.b16 %v31
  %v70 = vunpack.c.l.b16 %v32
  %v71 = vunpack.c.l.b16 %v33
  %v72 = vunpack.c.l.b16 %v34
  %v73 = vunpack.c.l.b16 %v35
  %v74 = vunpack.c.l.b16 %v36
  %v75 = vunpack.c.l.b16 %v37
  %v76 = vunpack.c.l.b16 %v38
  %v77 = vunpack.c.l.b16 %v39
  %v78 = vunpack.c.l.b16 %v40
  %v79 = vunpack.c.l.b16 %v41
  %v80 = vunpack.c.l.b16 %v42
  %v81 = vunpack.c.l.b16 %v43
  %v82 = vunpack.c.l.b16 %v44
  %v83 = vunpack.c.l.b16 %v45
  %v84 = vunpack.c.l.b16 %v46
  %v85 = vpack.c.b16 %v70, %v69
  %v86 = vpack.c.b16 %v72, %v71
  %v87 = vpack.c.b16 %v74, %v73
  %v88 = vpack.c.b16 %v76, %v75
  %v89 = vpack.c.b16 %v78, %v77
  %v90 = vpack.c.b16 %v80, %v79
  %v91 = vpack.c.b16 %v82, %v81
  %v92 = vpack.c.b16 %v84, %v83
  %v99 = vunpack.c.l.b16 %v47
  %v100 = vunpack.c.h.b16 %v47
  %v101 = vunpack.c.l.b16 %v48
  %v102 = vunpack.c.h.b16 %v48
  %v103 = vunpack.c.l.b16 %v49
  %v104 = vunpack.c.h.b16 %v49
  %v105 = vunpack.c.l.b16 %v50
  %v106 = vunpack.c.h.b16 %v50
  %v107 = vunpack.c.l.b16 %v51
  %v108 = vunpack.c.h.b16 %v51
  %v109 = vunpack.c.l.b16 %v52
  %v110 = vunpack.c.h.b16 %v52
  %v111 = vpack.c.b16 %v103, %v99
  %v112 = vpack.c.b16 %v104, %v100
  %v113 = vpack.c.b16 %v105, %v101
  %v114 = vpack.c.b16 %v106, %v102
  %v115 = vpack.c.b16 %v107, %v107
  %v116 = vpack.c.b16 %v108, %v108
  %v117 = vpack.c.b16 %v109, %v109
  %v118 = vpack.c.b16 %v110, %v110
  %vm123 = vcmask 138240
  %v125 = vsel %vm123, %v85, 0
  %v128 = vsel %vm123, %v86, 0
  %v131 = vsel %vm123, %v87, 0
  %v134 = vsel %vm123, %v88, 0
  %v137 = vsel %vm123, %v89, 0
  %v140 = vsel %vm123, %v90, 0
  %v143 = vsel %vm123, %v91, 0
  %v146 = vsel %vm123, %v92, 0
  %vm148 = vcmask 1040384
  %v149 = vsel 0, 4294967295, 65535
  %v150 = vsel %vm148, %v149, 0
  %v152 = vand.u32 %v115, %v150
  %v155 = vand.u32 %v116, %v150
  %v158 = vand.u32 %v117, %v150
  %v161 = vand.u32 %v118, %v150
  %163 = vmatpush.bf16.msra.mxu0 0
  %164 = vmatpush.bf16.msra.mxu0 0
  %165 = vmatpush.bf16.msra.mxu0 0
  %166 = vmatpush.bf16.msra.mxu0 0
  %167 = vmatpush.bf16.msra.mxu0 0
  %168 = vmatpush.bf16.msra.mxu0 0
  %169 = vmatpush.bf16.msra.mxu0 %v152
  %170 = vmatpush.bf16.msra.mxu0 %v111
  %171 = vmatmul.bf16.gmra.mxu0 %v125
  %v172 = vpop.f32.mrf.mxu0
  %v173 = vadd.f32 0.0, %v172
  %v174 = vpop.f32.mrf.mxu0
  %v175 = vadd.f32 0.0, %v174
  %176 = vmatmul.bf16.gmra.mxu0 %v128
  %v177 = vpop.f32.mrf.mxu0
  %v178 = vadd.f32 0.0, %v177
  %v179 = vpop.f32.mrf.mxu0
  %v180 = vadd.f32 0.0, %v179
  %181 = vmatmul.bf16.gmra.mxu0 %v131
  %v182 = vpop.f32.mrf.mxu0
  %v183 = vadd.f32 0.0, %v182
  %v184 = vpop.f32.mrf.mxu0
  %v185 = vadd.f32 0.0, %v184
  %186 = vmatmul.bf16.gmra.mxu0 %v134
  %v187 = vpop.f32.mrf.mxu0
  %v188 = vadd.f32 0.0, %v187
  %v189 = vpop.f32.mrf.mxu0
  %v190 = vadd.f32 0.0, %v189
  %191 = vmatmul.bf16.gmra.mxu0 %v137
  %v192 = vpop.f32.mrf.mxu0
  %v193 = vadd.f32 0.0, %v192
  %v194 = vpop.f32.mrf.mxu0
  %v195 = vadd.f32 0.0, %v194
  %196 = vmatmul.bf16.gmra.mxu0 %v140
  %v197 = vpop.f32.mrf.mxu0
  %v198 = vadd.f32 0.0, %v197
  %v199 = vpop.f32.mrf.mxu0
  %v200 = vadd.f32 0.0, %v199
  %201 = vmatmul.bf16.gmra.mxu0 %v143
  %v202 = vpop.f32.mrf.mxu0
  %v203 = vadd.f32 0.0, %v202
  %v204 = vpop.f32.mrf.mxu0
  %v205 = vadd.f32 0.0, %v204
  %206 = vmatmul.bf16.gmra.mxu0 %v146
  %v207 = vpop.f32.mrf.mxu0
  %v208 = vadd.f32 0.0, %v207
  %v209 = vpop.f32.mrf.mxu0
  %v210 = vadd.f32 0.0, %v209
  %211 = vdwg.mxu0
  %212 = vmatpush.bf16.msra.mxu0 0
  %213 = vmatpush.bf16.msra.mxu0 0
  %214 = vmatpush.bf16.msra.mxu0 0
  %215 = vmatpush.bf16.msra.mxu0 0
  %216 = vmatpush.bf16.msra.mxu0 0
  %217 = vmatpush.bf16.msra.mxu0 0
  %218 = vmatpush.bf16.msra.mxu0 %v155
  %219 = vmatpush.bf16.msra.mxu0 %v112
  %220 = vmatmul.bf16.gmra.mxu0 %v125
  %v221 = vpop.f32.mrf.mxu0
  %v222 = vadd.f32 0.0, %v221
  %v223 = vpop.f32.mrf.mxu0
  %v224 = vadd.f32 0.0, %v223
  %225 = vmatmul.bf16.gmra.mxu0 %v128
  %v226 = vpop.f32.mrf.mxu0
  %v227 = vadd.f32 0.0, %v226
  %v228 = vpop.f32.mrf.mxu0
  %v229 = vadd.f32 0.0, %v228
  %230 = vmatmul.bf16.gmra.mxu0 %v131
  %v231 = vpop.f32.mrf.mxu0
  %v232 = vadd.f32 0.0, %v231
  %v233 = vpop.f32.mrf.mxu0
  %v234 = vadd.f32 0.0, %v233
  %235 = vmatmul.bf16.gmra.mxu0 %v134
  %v236 = vpop.f32.mrf.mxu0
  %v237 = vadd.f32 0.0, %v236
  %v238 = vpop.f32.mrf.mxu0
  %v239 = vadd.f32 0.0, %v238
  %240 = vmatmul.bf16.gmra.mxu0 %v137
  %v241 = vpop.f32.mrf.mxu0
  %v242 = vadd.f32 0.0, %v241
  %v243 = vpop.f32.mrf.mxu0
  %v244 = vadd.f32 0.0, %v243
  %245 = vmatmul.bf16.gmra.mxu0 %v140
  %v246 = vpop.f32.mrf.mxu0
  %v247 = vadd.f32 0.0, %v246
  %v248 = vpop.f32.mrf.mxu0
  %v249 = vadd.f32 0.0, %v248
  %250 = vmatmul.bf16.gmra.mxu0 %v143
  %v251 = vpop.f32.mrf.mxu0
  %v252 = vadd.f32 0.0, %v251
  %v253 = vpop.f32.mrf.mxu0
  %v254 = vadd.f32 0.0, %v253
  %255 = vmatmul.bf16.gmra.mxu0 %v146
  %v256 = vpop.f32.mrf.mxu0
  %v257 = vadd.f32 0.0, %v256
  %v258 = vpop.f32.mrf.mxu0
  %v259 = vadd.f32 0.0, %v258
  %260 = vdwg.mxu0
  %261 = vmatpush.bf16.msra.mxu0 0
  %262 = vmatpush.bf16.msra.mxu0 0
  %263 = vmatpush.bf16.msra.mxu0 0
  %264 = vmatpush.bf16.msra.mxu0 0
  %265 = vmatpush.bf16.msra.mxu0 0
  %266 = vmatpush.bf16.msra.mxu0 0
  %267 = vmatpush.bf16.msra.mxu0 %v158
  %268 = vmatpush.bf16.msra.mxu0 %v113
  %269 = vmatmul.bf16.gmra.mxu0 %v125
  %v270 = vpop.f32.mrf.mxu0
  %v271 = vadd.f32 0.0, %v270
  %v272 = vpop.f32.mrf.mxu0
  %v273 = vadd.f32 0.0, %v272
  %274 = vmatmul.bf16.gmra.mxu0 %v128
  %v275 = vpop.f32.mrf.mxu0
  %v276 = vadd.f32 0.0, %v275
  %v277 = vpop.f32.mrf.mxu0
  %v278 = vadd.f32 0.0, %v277
  %279 = vmatmul.bf16.gmra.mxu0 %v131
  %v280 = vpop.f32.mrf.mxu0
  %v281 = vadd.f32 0.0, %v280
  %v282 = vpop.f32.mrf.mxu0
  %v283 = vadd.f32 0.0, %v282
  %284 = vmatmul.bf16.gmra.mxu0 %v134
  %v285 = vpop.f32.mrf.mxu0
  %v286 = vadd.f32 0.0, %v285
  %v287 = vpop.f32.mrf.mxu0
  %v288 = vadd.f32 0.0, %v287
  %289 = vmatmul.bf16.gmra.mxu0 %v137
  %v290 = vpop.f32.mrf.mxu0
  %v291 = vadd.f32 0.0, %v290
  %v292 = vpop.f32.mrf.mxu0
  %v293 = vadd.f32 0.0, %v292
  %294 = vmatmul.bf16.gmra.mxu0 %v140
  %v295 = vpop.f32.mrf.mxu0
  %v296 = vadd.f32 0.0, %v295
  %v297 = vpop.f32.mrf.mxu0
  %v298 = vadd.f32 0.0, %v297
  %299 = vmatmul.bf16.gmra.mxu0 %v143
  %v300 = vpop.f32.mrf.mxu0
  %v301 = vadd.f32 0.0, %v300
  %v302 = vpop.f32.mrf.mxu0
  %v303 = vadd.f32 0.0, %v302
  %304 = vmatmul.bf16.gmra.mxu0 %v146
  %v305 = vpop.f32.mrf.mxu0
  %v306 = vadd.f32 0.0, %v305
  %v307 = vpop.f32.mrf.mxu0
  %v308 = vadd.f32 0.0, %v307
  %309 = vdwg.mxu0
  %310 = vmatpush.bf16.msra.mxu0 0
  %311 = vmatpush.bf16.msra.mxu0 0
  %312 = vmatpush.bf16.msra.mxu0 0
  %313 = vmatpush.bf16.msra.mxu0 0
  %314 = vmatpush.bf16.msra.mxu0 0
  %315 = vmatpush.bf16.msra.mxu0 0
  %316 = vmatpush.bf16.msra.mxu0 %v161
  %317 = vmatpush.bf16.msra.mxu0 %v114
  %318 = vmatmul.bf16.gmra.mxu0 %v125
  %v319 = vpop.f32.mrf.mxu0
  %v320 = vadd.f32 0.0, %v319
  %v321 = vpop.f32.mrf.mxu0
  %v322 = vadd.f32 0.0, %v321
  %323 = vmatmul.bf16.gmra.mxu0 %v128
  %v324 = vpop.f32.mrf.mxu0
  %v325 = vadd.f32 0.0, %v324
  %v326 = vpop.f32.mrf.mxu0
  %v327 = vadd.f32 0.0, %v326
  %328 = vmatmul.bf16.gmra.mxu0 %v131
  %v329 = vpop.f32.mrf.mxu0
  %v330 = vadd.f32 0.0, %v329
  %v331 = vpop.f32.mrf.mxu0
  %v332 = vadd.f32 0.0, %v331
  %333 = vmatmul.bf16.gmra.mxu0 %v134
  %v334 = vpop.f32.mrf.mxu0
  %v335 = vadd.f32 0.0, %v334
  %v336 = vpop.f32.mrf.mxu0
  %v337 = vadd.f32 0.0, %v336
  %338 = vmatmul.bf16.gmra.mxu0 %v137
  %v339 = vpop.f32.mrf.mxu0
  %v340 = vadd.f32 0.0, %v339
  %v341 = vpop.f32.mrf.mxu0
  %v342 = vadd.f32 0.0, %v341
  %343 = vmatmul.bf16.gmra.mxu0 %v140
  %v344 = vpop.f32.mrf.mxu0
  %v345 = vadd.f32 0.0, %v344
  %v346 = vpop.f32.mrf.mxu0
  %v347 = vadd.f32 0.0, %v346
  %348 = vmatmul.bf16.gmra.mxu0 %v143
  %v349 = vpop.f32.mrf.mxu0
  %v350 = vadd.f32 0.0, %v349
  %v351 = vpop.f32.mrf.mxu0
  %v352 = vadd.f32 0.0, %v351
  %353 = vmatmul.bf16.gmra.mxu0 %v146
  %v354 = vpop.f32.mrf.mxu0
  %v355 = vadd.f32 0.0, %v354
  %v356 = vpop.f32.mrf.mxu0
  %v357 = vadd.f32 0.0, %v356
  %358 = vdwg.mxu0
  %v359 = vmul.f32 %v173, 0.01
  %v360 = vmul.f32 %v222, 0.01
  %v361 = vmul.f32 %v271, 0.01
  %v362 = vmul.f32 %v320, 0.01
  %v363 = vmul.f32 %v175, 0.01
  %v364 = vmul.f32 %v224, 0.01
  %v365 = vmul.f32 %v273, 0.01
  %v366 = vmul.f32 %v322, 0.01
  %v367 = vmul.f32 %v178, 0.01
  %v368 = vmul.f32 %v227, 0.01
  %v369 = vmul.f32 %v276, 0.01
  %v370 = vmul.f32 %v325, 0.01
  %v371 = vmul.f32 %v180, 0.01
  %v372 = vmul.f32 %v229, 0.01
  %v373 = vmul.f32 %v278, 0.01
  %v374 = vmul.f32 %v327, 0.01
  %v375 = vmul.f32 %v183, 0.01
  %v376 = vmul.f32 %v232, 0.01
  %v377 = vmul.f32 %v281, 0.01
  %v378 = vmul.f32 %v330, 0.01
  %v379 = vmul.f32 %v185, 0.01
  %v380 = vmul.f32 %v234, 0.01
  %v381 = vmul.f32 %v283, 0.01
  %v382 = vmul.f32 %v332, 0.01
  %v383 = vmul.f32 %v188, 0.01
  %v384 = vmul.f32 %v237, 0.01
  %v385 = vmul.f32 %v286, 0.01
  %v386 = vmul.f32 %v335, 0.01
  %v387 = vmul.f32 %v190, 0.01
  %v388 = vmul.f32 %v239, 0.01
  %v389 = vmul.f32 %v288, 0.01
  %v390 = vmul.f32 %v337, 0.01
  %v391 = vmul.f32 %v193, 0.01
  %v392 = vmul.f32 %v242, 0.01
  %v393 = vmul.f32 %v291, 0.01
  %v394 = vmul.f32 %v340, 0.01
  %v395 = vmul.f32 %v195, 0.01
  %v396 = vmul.f32 %v244, 0.01
  %v397 = vmul.f32 %v293, 0.01
  %v398 = vmul.f32 %v342, 0.01
  %v399 = vmul.f32 %v198, 0.01
  %v400 = vmul.f32 %v247, 0.01
  %v401 = vmul.f32 %v296, 0.01
  %v402 = vmul.f32 %v345, 0.01
  %v403 = vmul.f32 %v200, 0.01
  %v404 = vmul.f32 %v249, 0.01
  %v405 = vmul.f32 %v298, 0.01
  %v406 = vmul.f32 %v347, 0.01
  %v407 = vmul.f32 %v203, 0.01
  %v408 = vmul.f32 %v252, 0.01
  %v409 = vmul.f32 %v301, 0.01
  %v410 = vmul.f32 %v350, 0.01
  %v411 = vmul.f32 %v205, 0.01
  %v412 = vmul.f32 %v254, 0.01
  %v413 = vmul.f32 %v303, 0.01
  %v414 = vmul.f32 %v352, 0.01
  %v415 = vmul.f32 %v208, 0.01
  %v416 = vmul.f32 %v257, 0.01
  %v417 = vmul.f32 %v306, 0.01
  %v418 = vmul.f32 %v355, 0.01
  %v419 = vmul.f32 %v210, 0.01
  %v420 = vmul.f32 %v259, 0.01
  %v421 = vmul.f32 %v308, 0.01
  %v422 = vmul.f32 %v357, 0.01
  %v423 = vmax.f32 %v173, %v359
  %v424 = vmax.f32 %v222, %v360
  %v425 = vmax.f32 %v271, %v361
  %v426 = vmax.f32 %v320, %v362
  %v427 = vmax.f32 %v175, %v363
  %v428 = vmax.f32 %v224, %v364
  %v429 = vmax.f32 %v273, %v365
  %v430 = vmax.f32 %v322, %v366
  %v431 = vmax.f32 %v178, %v367
  %v432 = vmax.f32 %v227, %v368
  %v433 = vmax.f32 %v276, %v369
  %v434 = vmax.f32 %v325, %v370
  %v435 = vmax.f32 %v180, %v371
  %v436 = vmax.f32 %v229, %v372
  %v437 = vmax.f32 %v278, %v373
  %v438 = vmax.f32 %v327, %v374
  %v439 = vmax.f32 %v183, %v375
  %v440 = vmax.f32 %v232, %v376
  %v441 = vmax.f32 %v281, %v377
  %v442 = vmax.f32 %v330, %v378
  %v443 = vmax.f32 %v185, %v379
  %v444 = vmax.f32 %v234, %v380
  %v445 = vmax.f32 %v283, %v381
  %v446 = vmax.f32 %v332, %v382
  %v447 = vmax.f32 %v188, %v383
  %v448 = vmax.f32 %v237, %v384
  %v449 = vmax.f32 %v286, %v385
  %v450 = vmax.f32 %v335, %v386
  %v451 = vmax.f32 %v190, %v387
  %v452 = vmax.f32 %v239, %v388
  %v453 = vmax.f32 %v288, %v389
  %v454 = vmax.f32 %v337, %v390
  %v455 = vmax.f32 %v193, %v391
  %v456 = vmax.f32 %v242, %v392
  %v457 = vmax.f32 %v291, %v393
  %v458 = vmax.f32 %v340, %v394
  %v459 = vmax.f32 %v195, %v395
  %v460 = vmax.f32 %v244, %v396
  %v461 = vmax.f32 %v293, %v397
  %v462 = vmax.f32 %v342, %v398
  %v463 = vmax.f32 %v198, %v399
  %v464 = vmax.f32 %v247, %v400
  %v465 = vmax.f32 %v296, %v401
  %v466 = vmax.f32 %v345, %v402
  %v467 = vmax.f32 %v200, %v403
  %v468 = vmax.f32 %v249, %v404
  %v469 = vmax.f32 %v298, %v405
  %v470 = vmax.f32 %v347, %v406
  %v471 = vmax.f32 %v203, %v407
  %v472 = vmax.f32 %v252, %v408
  %v473 = vmax.f32 %v301, %v409
  %v474 = vmax.f32 %v350, %v410
  %v475 = vmax.f32 %v205, %v411
  %v476 = vmax.f32 %v254, %v412
  %v477 = vmax.f32 %v303, %v413
  %v478 = vmax.f32 %v352, %v414
  %v479 = vmax.f32 %v208, %v415
  %v480 = vmax.f32 %v257, %v416
  %v481 = vmax.f32 %v306, %v417
  %v482 = vmax.f32 %v355, %v418
  %v483 = vmax.f32 %v210, %v419
  %v484 = vmax.f32 %v259, %v420
  %v485 = vmax.f32 %v308, %v421
  %v486 = vmax.f32 %v357, %v422
  %v487 = vld [vmem:[%s2] sm:$0xf]
  %v488 = vld [vmem:[%s2 + $0x4] sm:$0xf]
  %v489 = vld [vmem:[%s2 + $0x8] sm:$0xf]
  %v490 = vld [vmem:[%s2 + $0xc] sm:$0xf]
  %v491 = vld [vmem:[%s2 + $0x10] sm:$0xf]
  %v492 = vld [vmem:[%s2 + $0x14] sm:$0xf]
  %v493 = vld [vmem:[%s2 + $0x18] sm:$0xf]
  %v494 = vld [vmem:[%s2 + $0x1c] sm:$0xf]
  %v495 = vld [vmem:[%s2 + $0x20] sm:$0xf]
  %v496 = vld [vmem:[%s2 + $0x24] sm:$0xf]
  %v497 = vld [vmem:[%s2 + $0x28] sm:$0xf]
  %v498 = vld [vmem:[%s2 + $0x2c] sm:$0xf]
  %v499 = vld [vmem:[%s2 + $0x30] sm:$0xf]
  %v500 = vld [vmem:[%s2 + $0x34] sm:$0xf]
  %v501 = vld [vmem:[%s2 + $0x38] sm:$0xf]
  %v502 = vld [vmem:[%s2 + $0x3c] sm:$0xf]
  %v503 = vpack.c.bf16 %v427, %v423
  %v504 = vpack.c.bf16 %v428, %v424
  %v505 = vpack.c.bf16 %v429, %v425
  %v506 = vpack.c.bf16 %v430, %v426
  %v507 = vpack.c.bf16 %v435, %v431
  %v508 = vpack.c.bf16 %v436, %v432
  %v509 = vpack.c.bf16 %v437, %v433
  %v510 = vpack.c.bf16 %v438, %v434
  %v511 = vpack.c.bf16 %v443, %v439
  %v512 = vpack.c.bf16 %v444, %v440
  %v513 = vpack.c.bf16 %v445, %v441
  %v514 = vpack.c.bf16 %v446, %v442
  %v515 = vpack.c.bf16 %v451, %v447
  %v516 = vpack.c.bf16 %v452, %v448
  %v517 = vpack.c.bf16 %v453, %v449
  %v518 = vpack.c.bf16 %v454, %v450
  %v519 = vpack.c.bf16 %v459, %v455
  %v520 = vpack.c.bf16 %v460, %v456
  %v521 = vpack.c.bf16 %v461, %v457
  %v522 = vpack.c.bf16 %v462, %v458
  %v523 = vpack.c.bf16 %v467, %v463
  %v524 = vpack.c.bf16 %v468, %v464
  %v525 = vpack.c.bf16 %v469, %v465
  %v526 = vpack.c.bf16 %v470, %v466
  %v527 = vpack.c.bf16 %v475, %v471
  %v528 = vpack.c.bf16 %v476, %v472
  %v529 = vpack.c.bf16 %v477, %v473
  %v530 = vpack.c.bf16 %v478, %v474
  %v531 = vpack.c.bf16 %v483, %v479
  %v532 = vpack.c.bf16 %v484, %v480
  %v533 = vpack.c.bf16 %v485, %v481
  %v534 = vpack.c.bf16 %v486, %v482
  %v535 = vld [vmem:[%s3] sm:$0xff]
  %v536 = vld [vmem:[%s3 + $0x8] sm:$0xff]
  %v537 = vld [vmem:[%s3 + $0x10] sm:$0xff]
  %v538 = vld [vmem:[%s3 + $0x18] sm:$0xff]
  %v539 = vld [vmem:[%s3 + $0x20] sm:$0xff]
  %v540 = vld [vmem:[%s3 + $0x28] sm:$0xff]
  %v541 = vld [vmem:[%s3 + $0x30] sm:$0xff]
  %v542 = vld [vmem:[%s3 + $0x38] sm:$0xff]
  %v543 = vld [vmem:[%s3 + $0x40] sm:$0xff]
  %v544 = vld [vmem:[%s3 + $0x48] sm:$0xff]
  %v545 = vld [vmem:[%s3 + $0x50] sm:$0xff]
  %v546 = vld [vmem:[%s3 + $0x58] sm:$0xff]
  %v547 = vld [vmem:[%s3 + $0x60] sm:$0xff]
  %v548 = vld [vmem:[%s3 + $0x68] sm:$0xff]
  %v549 = vld [vmem:[%s3 + $0x70] sm:$0xff]
  %v550 = vld [vmem:[%s3 + $0x78] sm:$0xff]
  %552 = vset.pattern.permute.xlu0 0
  %553 = vperm.xlu0 %552, %v535
  %v554 = vpop.permute.xlu0 %553
  %557 = vset.pattern.permute.xlu0 0
  %558 = vperm.xlu0 %557, %v536
  %v559 = vpop.permute.xlu0 %558
  %562 = vset.pattern.permute.xlu0 0
  %563 = vperm.xlu0 %562, %v537
  %v564 = vpop.permute.xlu0 %563
  %567 = vset.pattern.permute.xlu0 0
  %568 = vperm.xlu0 %567, %v538
  %v569 = vpop.permute.xlu0 %568
  %572 = vset.pattern.permute.xlu0 0
  %573 = vperm.xlu0 %572, %v539
  %v574 = vpop.permute.xlu0 %573
  %577 = vset.pattern.permute.xlu0 0
  %578 = vperm.xlu0 %577, %v540
  %v579 = vpop.permute.xlu0 %578
  %582 = vset.pattern.permute.xlu0 0
  %583 = vperm.xlu0 %582, %v541
  %v584 = vpop.permute.xlu0 %583
  %587 = vset.pattern.permute.xlu0 0
  %588 = vperm.xlu0 %587, %v542
  %v589 = vpop.permute.xlu0 %588
  %592 = vset.pattern.permute.xlu0 0
  %593 = vperm.xlu0 %592, %v543
  %v594 = vpop.permute.xlu0 %593
  %597 = vset.pattern.permute.xlu0 0
  %598 = vperm.xlu0 %597, %v544
  %v599 = vpop.permute.xlu0 %598
  %602 = vset.pattern.permute.xlu0 0
  %603 = vperm.xlu0 %602, %v545
  %v604 = vpop.permute.xlu0 %603
  %607 = vset.pattern.permute.xlu0 0
  %608 = vperm.xlu0 %607, %v546
  %v609 = vpop.permute.xlu0 %608
  %612 = vset.pattern.permute.xlu0 0
  %613 = vperm.xlu0 %612, %v547
  %v614 = vpop.permute.xlu0 %613
  %617 = vset.pattern.permute.xlu0 0
  %618 = vperm.xlu0 %617, %v548
  %v619 = vpop.permute.xlu0 %618
  %622 = vset.pattern.permute.xlu0 0
  %623 = vperm.xlu0 %622, %v549
  %v624 = vpop.permute.xlu0 %623
  %627 = vset.pattern.permute.xlu0 0
  %628 = vperm.xlu0 %627, %v550
  %v629 = vpop.permute.xlu0 %628
  %v647 = vunpack.c.l.b16 %v487
  %v648 = vunpack.c.l.b16 %v488
  %v649 = vunpack.c.l.b16 %v489
  %v650 = vunpack.c.l.b16 %v490
  %v651 = vunpack.c.l.b16 %v491
  %v652 = vunpack.c.l.b16 %v492
  %v653 = vunpack.c.l.b16 %v493
  %v654 = vunpack.c.l.b16 %v494
  %v655 = vunpack.c.l.b16 %v495
  %v656 = vunpack.c.l.b16 %v496
  %v657 = vunpack.c.l.b16 %v497
  %v658 = vunpack.c.l.b16 %v498
  %v659 = vunpack.c.l.b16 %v499
  %v660 = vunpack.c.l.b16 %v500
  %v661 = vunpack.c.l.b16 %v501
  %v662 = vunpack.c.l.b16 %v502
  %v663 = vpack.c.b16 %v648, %v647
  %v664 = vpack.c.b16 %v650, %v649
  %v665 = vpack.c.b16 %v652, %v651
  %v666 = vpack.c.b16 %v654, %v653
  %v667 = vpack.c.b16 %v656, %v655
  %v668 = vpack.c.b16 %v658, %v657
  %v669 = vpack.c.b16 %v660, %v659
  %v670 = vpack.c.b16 %v662, %v661
  %679 = vmatpush.bf16.msra.mxu0 %v531
  %680 = vmatpush.bf16.msra.mxu0 %v527
  %681 = vmatpush.bf16.msra.mxu0 %v523
  %682 = vmatpush.bf16.msra.mxu0 %v519
  %683 = vmatpush.bf16.msra.mxu0 %v515
  %684 = vmatpush.bf16.msra.mxu0 %v511
  %685 = vmatpush.bf16.msra.mxu0 %v507
  %686 = vmatpush.bf16.msra.mxu0 %v503
  %687 = vmatmul.bf16.gmra.mxu0 %v663
  %v688 = vpop.f32.mrf.mxu0
  %v689 = vadd.f32 %v554, %v688
  %v690 = vpop.f32.mrf.mxu0
  %v691 = vadd.f32 %v559, %v690
  %692 = vmatmul.bf16.gmra.mxu0 %v664
  %v693 = vpop.f32.mrf.mxu0
  %v694 = vadd.f32 %v564, %v693
  %v695 = vpop.f32.mrf.mxu0
  %v696 = vadd.f32 %v569, %v695
  %697 = vmatmul.bf16.gmra.mxu0 %v665
  %v698 = vpop.f32.mrf.mxu0
  %v699 = vadd.f32 %v574, %v698
  %v700 = vpop.f32.mrf.mxu0
  %v701 = vadd.f32 %v579, %v700
  %702 = vmatmul.bf16.gmra.mxu0 %v666
  %v703 = vpop.f32.mrf.mxu0
  %v704 = vadd.f32 %v584, %v703
  %v705 = vpop.f32.mrf.mxu0
  %v706 = vadd.f32 %v589, %v705
  %707 = vmatmul.bf16.gmra.mxu0 %v667
  %v708 = vpop.f32.mrf.mxu0
  %v709 = vadd.f32 %v594, %v708
  %v710 = vpop.f32.mrf.mxu0
  %v711 = vadd.f32 %v599, %v710
  %712 = vmatmul.bf16.gmra.mxu0 %v668
  %v713 = vpop.f32.mrf.mxu0
  %v714 = vadd.f32 %v604, %v713
  %v715 = vpop.f32.mrf.mxu0
  %v716 = vadd.f32 %v609, %v715
  %717 = vmatmul.bf16.gmra.mxu0 %v669
  %v718 = vpop.f32.mrf.mxu0
  %v719 = vadd.f32 %v614, %v718
  %v720 = vpop.f32.mrf.mxu0
  %v721 = vadd.f32 %v619, %v720
  %722 = vmatmul.bf16.gmra.mxu0 %v670
  %v723 = vpop.f32.mrf.mxu0
  %v724 = vadd.f32 %v624, %v723
  %v725 = vpop.f32.mrf.mxu0
  %v726 = vadd.f32 %v629, %v725
  %727 = vdwg.mxu0
  %728 = vmatpush.bf16.msra.mxu0 %v532
  %729 = vmatpush.bf16.msra.mxu0 %v528
  %730 = vmatpush.bf16.msra.mxu0 %v524
  %731 = vmatpush.bf16.msra.mxu0 %v520
  %732 = vmatpush.bf16.msra.mxu0 %v516
  %733 = vmatpush.bf16.msra.mxu0 %v512
  %734 = vmatpush.bf16.msra.mxu0 %v508
  %735 = vmatpush.bf16.msra.mxu0 %v504
  %736 = vmatmul.bf16.gmra.mxu0 %v663
  %v737 = vpop.f32.mrf.mxu0
  %v738 = vadd.f32 %v554, %v737
  %v739 = vpop.f32.mrf.mxu0
  %v740 = vadd.f32 %v559, %v739
  %741 = vmatmul.bf16.gmra.mxu0 %v664
  %v742 = vpop.f32.mrf.mxu0
  %v743 = vadd.f32 %v564, %v742
  %v744 = vpop.f32.mrf.mxu0
  %v745 = vadd.f32 %v569, %v744
  %746 = vmatmul.bf16.gmra.mxu0 %v665
  %v747 = vpop.f32.mrf.mxu0
  %v748 = vadd.f32 %v574, %v747
  %v749 = vpop.f32.mrf.mxu0
  %v750 = vadd.f32 %v579, %v749
  %751 = vmatmul.bf16.gmra.mxu0 %v666
  %v752 = vpop.f32.mrf.mxu0
  %v753 = vadd.f32 %v584, %v752
  %v754 = vpop.f32.mrf.mxu0
  %v755 = vadd.f32 %v589, %v754
  %756 = vmatmul.bf16.gmra.mxu0 %v667
  %v757 = vpop.f32.mrf.mxu0
  %v758 = vadd.f32 %v594, %v757
  %v759 = vpop.f32.mrf.mxu0
  %v760 = vadd.f32 %v599, %v759
  %761 = vmatmul.bf16.gmra.mxu0 %v668
  %v762 = vpop.f32.mrf.mxu0
  %v763 = vadd.f32 %v604, %v762
  %v764 = vpop.f32.mrf.mxu0
  %v765 = vadd.f32 %v609, %v764
  %766 = vmatmul.bf16.gmra.mxu0 %v669
  %v767 = vpop.f32.mrf.mxu0
  %v768 = vadd.f32 %v614, %v767
  %v769 = vpop.f32.mrf.mxu0
  %v770 = vadd.f32 %v619, %v769
  %771 = vmatmul.bf16.gmra.mxu0 %v670
  %v772 = vpop.f32.mrf.mxu0
  %v773 = vadd.f32 %v624, %v772
  %v774 = vpop.f32.mrf.mxu0
  %v775 = vadd.f32 %v629, %v774
  %776 = vdwg.mxu0
  %777 = vmatpush.bf16.msra.mxu0 %v533
  %778 = vmatpush.bf16.msra.mxu0 %v529
  %779 = vmatpush.bf16.msra.mxu0 %v525
  %780 = vmatpush.bf16.msra.mxu0 %v521
  %781 = vmatpush.bf16.msra.mxu0 %v517
  %782 = vmatpush.bf16.msra.mxu0 %v513
  %783 = vmatpush.bf16.msra.mxu0 %v509
  %784 = vmatpush.bf16.msra.mxu0 %v505
  %785 = vmatmul.bf16.gmra.mxu0 %v663
  %v786 = vpop.f32.mrf.mxu0
  %v787 = vadd.f32 %v554, %v786
  %v788 = vpop.f32.mrf.mxu0
  %v789 = vadd.f32 %v559, %v788
  %790 = vmatmul.bf16.gmra.mxu0 %v664
  %v791 = vpop.f32.mrf.mxu0
  %v792 = vadd.f32 %v564, %v791
  %v793 = vpop.f32.mrf.mxu0
  %v794 = vadd.f32 %v569, %v793
  %795 = vmatmul.bf16.gmra.mxu0 %v665
  %v796 = vpop.f32.mrf.mxu0
  %v797 = vadd.f32 %v574, %v796
  %v798 = vpop.f32.mrf.mxu0
  %v799 = vadd.f32 %v579, %v798
  %800 = vmatmul.bf16.gmra.mxu0 %v666
  %v801 = vpop.f32.mrf.mxu0
  %v802 = vadd.f32 %v584, %v801
  %v803 = vpop.f32.mrf.mxu0
  %v804 = vadd.f32 %v589, %v803
  %805 = vmatmul.bf16.gmra.mxu0 %v667
  %v806 = vpop.f32.mrf.mxu0
  %v807 = vadd.f32 %v594, %v806
  %v808 = vpop.f32.mrf.mxu0
  %v809 = vadd.f32 %v599, %v808
  %810 = vmatmul.bf16.gmra.mxu0 %v668
  %v811 = vpop.f32.mrf.mxu0
  %v812 = vadd.f32 %v604, %v811
  %v813 = vpop.f32.mrf.mxu0
  %v814 = vadd.f32 %v609, %v813
  %815 = vmatmul.bf16.gmra.mxu0 %v669
  %v816 = vpop.f32.mrf.mxu0
  %v817 = vadd.f32 %v614, %v816
  %v818 = vpop.f32.mrf.mxu0
  %v819 = vadd.f32 %v619, %v818
  %820 = vmatmul.bf16.gmra.mxu0 %v670
  %v821 = vpop.f32.mrf.mxu0
  %v822 = vadd.f32 %v624, %v821
  %v823 = vpop.f32.mrf.mxu0
  %v824 = vadd.f32 %v629, %v823
  %825 = vdwg.mxu0
  %826 = vmatpush.bf16.msra.mxu0 %v534
  %827 = vmatpush.bf16.msra.mxu0 %v530
  %828 = vmatpush.bf16.msra.mxu0 %v526
  %829 = vmatpush.bf16.msra.mxu0 %v522
  %830 = vmatpush.bf16.msra.mxu0 %v518
  %831 = vmatpush.bf16.msra.mxu0 %v514
  %832 = vmatpush.bf16.msra.mxu0 %v510
  %833 = vmatpush.bf16.msra.mxu0 %v506
  %834 = vmatmul.bf16.gmra.mxu0 %v663
  %v835 = vpop.f32.mrf.mxu0
  %v836 = vadd.f32 %v554, %v835
  %v837 = vpop.f32.mrf.mxu0
  %v838 = vadd.f32 %v559, %v837
  %839 = vmatmul.bf16.gmra.mxu0 %v664
  %v840 = vpop.f32.mrf.mxu0
  %v841 = vadd.f32 %v564, %v840
  %v842 = vpop.f32.mrf.mxu0
  %v843 = vadd.f32 %v569, %v842
  %844 = vmatmul.bf16.gmra.mxu0 %v665
  %v845 = vpop.f32.mrf.mxu0
  %v846 = vadd.f32 %v574, %v845
  %v847 = vpop.f32.mrf.mxu0
  %v848 = vadd.f32 %v579, %v847
  %849 = vmatmul.bf16.gmra.mxu0 %v666
  %v850 = vpop.f32.mrf.mxu0
  %v851 = vadd.f32 %v584, %v850
  %v852 = vpop.f32.mrf.mxu0
  %v853 = vadd.f32 %v589, %v852
  %854 = vmatmul.bf16.gmra.mxu0 %v667
  %v855 = vpop.f32.mrf.mxu0
  %v856 = vadd.f32 %v594, %v855
  %v857 = vpop.f32.mrf.mxu0
  %v858 = vadd.f32 %v599, %v857
  %859 = vmatmul.bf16.gmra.mxu0 %v668
  %v860 = vpop.f32.mrf.mxu0
  %v861 = vadd.f32 %v604, %v860
  %v862 = vpop.f32.mrf.mxu0
  %v863 = vadd.f32 %v609, %v862
  %864 = vmatmul.bf16.gmra.mxu0 %v669
  %v865 = vpop.f32.mrf.mxu0
  %v866 = vadd.f32 %v614, %v865
  %v867 = vpop.f32.mrf.mxu0
  %v868 = vadd.f32 %v619, %v867
  %869 = vmatmul.bf16.gmra.mxu0 %v670
  %v870 = vpop.f32.mrf.mxu0
  %v871 = vadd.f32 %v624, %v870
  %v872 = vpop.f32.mrf.mxu0
  %v873 = vadd.f32 %v629, %v872
  %874 = vdwg.mxu0
  %v875 = vmul.f32 %v689, 0.01
  %v876 = vmul.f32 %v738, 0.01
  %v877 = vmul.f32 %v787, 0.01
  %v878 = vmul.f32 %v836, 0.01
  %v879 = vmul.f32 %v691, 0.01
  %v880 = vmul.f32 %v740, 0.01
  %v881 = vmul.f32 %v789, 0.01
  %v882 = vmul.f32 %v838, 0.01
  %v883 = vmul.f32 %v694, 0.01
  %v884 = vmul.f32 %v743, 0.01
  %v885 = vmul.f32 %v792, 0.01
  %v886 = vmul.f32 %v841, 0.01
  %v887 = vmul.f32 %v696, 0.01
  %v888 = vmul.f32 %v745, 0.01
  %v889 = vmul.f32 %v794, 0.01
  %v890 = vmul.f32 %v843, 0.01
  %v891 = vmul.f32 %v699, 0.01
  %v892 = vmul.f32 %v748, 0.01
  %v893 = vmul.f32 %v797, 0.01
  %v894 = vmul.f32 %v846, 0.01
  %v895 = vmul.f32 %v701, 0.01
  %v896 = vmul.f32 %v750, 0.01
  %v897 = vmul.f32 %v799, 0.01
  %v898 = vmul.f32 %v848, 0.01
  %v899 = vmul.f32 %v704, 0.01
  %v900 = vmul.f32 %v753, 0.01
  %v901 = vmul.f32 %v802, 0.01
  %v902 = vmul.f32 %v851, 0.01
  %v903 = vmul.f32 %v706, 0.01
  %v904 = vmul.f32 %v755, 0.01
  %v905 = vmul.f32 %v804, 0.01
  %v906 = vmul.f32 %v853, 0.01
  %v907 = vmul.f32 %v709, 0.01
  %v908 = vmul.f32 %v758, 0.01
  %v909 = vmul.f32 %v807, 0.01
  %v910 = vmul.f32 %v856, 0.01
  %v911 = vmul.f32 %v711, 0.01
  %v912 = vmul.f32 %v760, 0.01
  %v913 = vmul.f32 %v809, 0.01
  %v914 = vmul.f32 %v858, 0.01
  %v915 = vmul.f32 %v714, 0.01
  %v916 = vmul.f32 %v763, 0.01
  %v917 = vmul.f32 %v812, 0.01
  %v918 = vmul.f32 %v861, 0.01
  %v919 = vmul.f32 %v716, 0.01
  %v920 = vmul.f32 %v765, 0.01
  %v921 = vmul.f32 %v814, 0.01
  %v922 = vmul.f32 %v863, 0.01
  %v923 = vmul.f32 %v719, 0.01
  %v924 = vmul.f32 %v768, 0.01
  %v925 = vmul.f32 %v817, 0.01
  %v926 = vmul.f32 %v866, 0.01
  %v927 = vmul.f32 %v721, 0.01
  %v928 = vmul.f32 %v770, 0.01
  %v929 = vmul.f32 %v819, 0.01
  %v930 = vmul.f32 %v868, 0.01
  %v931 = vmul.f32 %v724, 0.01
  %v932 = vmul.f32 %v773, 0.01
  %v933 = vmul.f32 %v822, 0.01
  %v934 = vmul.f32 %v871, 0.01
  %v935 = vmul.f32 %v726, 0.01
  %v936 = vmul.f32 %v775, 0.01
  %v937 = vmul.f32 %v824, 0.01
  %v938 = vmul.f32 %v873, 0.01
  %v939 = vmax.f32 %v689, %v875
  %v940 = vmax.f32 %v738, %v876
  %v941 = vmax.f32 %v787, %v877
  %v942 = vmax.f32 %v836, %v878
  %v943 = vmax.f32 %v691, %v879
  %v944 = vmax.f32 %v740, %v880
  %v945 = vmax.f32 %v789, %v881
  %v946 = vmax.f32 %v838, %v882
  %v947 = vmax.f32 %v694, %v883
  %v948 = vmax.f32 %v743, %v884
  %v949 = vmax.f32 %v792, %v885
  %v950 = vmax.f32 %v841, %v886
  %v951 = vmax.f32 %v696, %v887
  %v952 = vmax.f32 %v745, %v888
  %v953 = vmax.f32 %v794, %v889
  %v954 = vmax.f32 %v843, %v890
  %v955 = vmax.f32 %v699, %v891
  %v956 = vmax.f32 %v748, %v892
  %v957 = vmax.f32 %v797, %v893
  %v958 = vmax.f32 %v846, %v894
  %v959 = vmax.f32 %v701, %v895
  %v960 = vmax.f32 %v750, %v896
  %v961 = vmax.f32 %v799, %v897
  %v962 = vmax.f32 %v848, %v898
  %v963 = vmax.f32 %v704, %v899
  %v964 = vmax.f32 %v753, %v900
  %v965 = vmax.f32 %v802, %v901
  %v966 = vmax.f32 %v851, %v902
  %v967 = vmax.f32 %v706, %v903
  %v968 = vmax.f32 %v755, %v904
  %v969 = vmax.f32 %v804, %v905
  %v970 = vmax.f32 %v853, %v906
  %v971 = vmax.f32 %v709, %v907
  %v972 = vmax.f32 %v758, %v908
  %v973 = vmax.f32 %v807, %v909
  %v974 = vmax.f32 %v856, %v910
  %v975 = vmax.f32 %v711, %v911
  %v976 = vmax.f32 %v760, %v912
  %v977 = vmax.f32 %v809, %v913
  %v978 = vmax.f32 %v858, %v914
  %v979 = vmax.f32 %v714, %v915
  %v980 = vmax.f32 %v763, %v916
  %v981 = vmax.f32 %v812, %v917
  %v982 = vmax.f32 %v861, %v918
  %v983 = vmax.f32 %v716, %v919
  %v984 = vmax.f32 %v765, %v920
  %v985 = vmax.f32 %v814, %v921
  %v986 = vmax.f32 %v863, %v922
  %v987 = vmax.f32 %v719, %v923
  %v988 = vmax.f32 %v768, %v924
  %v989 = vmax.f32 %v817, %v925
  %v990 = vmax.f32 %v866, %v926
  %v991 = vmax.f32 %v721, %v927
  %v992 = vmax.f32 %v770, %v928
  %v993 = vmax.f32 %v819, %v929
  %v994 = vmax.f32 %v868, %v930
  %v995 = vmax.f32 %v724, %v931
  %v996 = vmax.f32 %v773, %v932
  %v997 = vmax.f32 %v822, %v933
  %v998 = vmax.f32 %v871, %v934
  %v999 = vmax.f32 %v726, %v935
  %v1000 = vmax.f32 %v775, %v936
  %v1001 = vmax.f32 %v824, %v937
  %v1002 = vmax.f32 %v873, %v938
  %v1003 = vld [vmem:[%s4] sm:$0xf]
  %v1004 = vld [vmem:[%s4 + $0x4] sm:$0xf]
  %v1005 = vld [vmem:[%s4 + $0x8] sm:$0xf]
  %v1006 = vld [vmem:[%s4 + $0xc] sm:$0xf]
  %v1007 = vld [vmem:[%s4 + $0x10] sm:$0xf]
  %v1008 = vld [vmem:[%s4 + $0x14] sm:$0xf]
  %v1009 = vld [vmem:[%s4 + $0x18] sm:$0xf]
  %v1010 = vld [vmem:[%s4 + $0x1c] sm:$0xf]
  %v1011 = vld [vmem:[%s4 + $0x20] sm:$0xf]
  %v1012 = vld [vmem:[%s4 + $0x24] sm:$0xf]
  %v1013 = vld [vmem:[%s4 + $0x28] sm:$0xf]
  %v1014 = vld [vmem:[%s4 + $0x2c] sm:$0xf]
  %v1015 = vld [vmem:[%s4 + $0x30] sm:$0xf]
  %v1016 = vld [vmem:[%s4 + $0x34] sm:$0xf]
  %v1017 = vld [vmem:[%s4 + $0x38] sm:$0xf]
  %v1018 = vld [vmem:[%s4 + $0x3c] sm:$0xf]
  %v1019 = vpack.c.bf16 %v943, %v939
  %v1020 = vpack.c.bf16 %v944, %v940
  %v1021 = vpack.c.bf16 %v945, %v941
  %v1022 = vpack.c.bf16 %v946, %v942
  %v1023 = vpack.c.bf16 %v951, %v947
  %v1024 = vpack.c.bf16 %v952, %v948
  %v1025 = vpack.c.bf16 %v953, %v949
  %v1026 = vpack.c.bf16 %v954, %v950
  %v1027 = vpack.c.bf16 %v959, %v955
  %v1028 = vpack.c.bf16 %v960, %v956
  %v1029 = vpack.c.bf16 %v961, %v957
  %v1030 = vpack.c.bf16 %v962, %v958
  %v1031 = vpack.c.bf16 %v967, %v963
  %v1032 = vpack.c.bf16 %v968, %v964
  %v1033 = vpack.c.bf16 %v969, %v965
  %v1034 = vpack.c.bf16 %v970, %v966
  %v1035 = vpack.c.bf16 %v975, %v971
  %v1036 = vpack.c.bf16 %v976, %v972
  %v1037 = vpack.c.bf16 %v977, %v973
  %v1038 = vpack.c.bf16 %v978, %v974
  %v1039 = vpack.c.bf16 %v983, %v979
  %v1040 = vpack.c.bf16 %v984, %v980
  %v1041 = vpack.c.bf16 %v985, %v981
  %v1042 = vpack.c.bf16 %v986, %v982
  %v1043 = vpack.c.bf16 %v991, %v987
  %v1044 = vpack.c.bf16 %v992, %v988
  %v1045 = vpack.c.bf16 %v993, %v989
  %v1046 = vpack.c.bf16 %v994, %v990
  %v1047 = vpack.c.bf16 %v999, %v995
  %v1048 = vpack.c.bf16 %v1000, %v996
  %v1049 = vpack.c.bf16 %v1001, %v997
  %v1050 = vpack.c.bf16 %v1002, %v998
  %v1051 = vld [vmem:[%s5] sm:$0xff]
  %v1052 = vld [vmem:[%s5 + $0x8] sm:$0xff]
  %v1053 = vld [vmem:[%s5 + $0x10] sm:$0xff]
  %v1054 = vld [vmem:[%s5 + $0x18] sm:$0xff]
  %v1055 = vld [vmem:[%s5 + $0x20] sm:$0xff]
  %v1056 = vld [vmem:[%s5 + $0x28] sm:$0xff]
  %v1057 = vld [vmem:[%s5 + $0x30] sm:$0xff]
  %v1058 = vld [vmem:[%s5 + $0x38] sm:$0xff]
  %v1059 = vld [vmem:[%s5 + $0x40] sm:$0xff]
  %v1060 = vld [vmem:[%s5 + $0x48] sm:$0xff]
  %v1061 = vld [vmem:[%s5 + $0x50] sm:$0xff]
  %v1062 = vld [vmem:[%s5 + $0x58] sm:$0xff]
  %v1063 = vld [vmem:[%s5 + $0x60] sm:$0xff]
  %v1064 = vld [vmem:[%s5 + $0x68] sm:$0xff]
  %v1065 = vld [vmem:[%s5 + $0x70] sm:$0xff]
  %v1066 = vld [vmem:[%s5 + $0x78] sm:$0xff]
  %1068 = vset.pattern.permute.xlu0 0
  %1069 = vperm.xlu0 %1068, %v1051
  %v1070 = vpop.permute.xlu0 %1069
  %1073 = vset.pattern.permute.xlu0 0
  %1074 = vperm.xlu0 %1073, %v1052
  %v1075 = vpop.permute.xlu0 %1074
  %1078 = vset.pattern.permute.xlu0 0
  %1079 = vperm.xlu0 %1078, %v1053
  %v1080 = vpop.permute.xlu0 %1079
  %1083 = vset.pattern.permute.xlu0 0
  %1084 = vperm.xlu0 %1083, %v1054
  %v1085 = vpop.permute.xlu0 %1084
  %1088 = vset.pattern.permute.xlu0 0
  %1089 = vperm.xlu0 %1088, %v1055
  %v1090 = vpop.permute.xlu0 %1089
  %1093 = vset.pattern.permute.xlu0 0
  %1094 = vperm.xlu0 %1093, %v1056
  %v1095 = vpop.permute.xlu0 %1094
  %1098 = vset.pattern.permute.xlu0 0
  %1099 = vperm.xlu0 %1098, %v1057
  %v1100 = vpop.permute.xlu0 %1099
  %1103 = vset.pattern.permute.xlu0 0
  %1104 = vperm.xlu0 %1103, %v1058
  %v1105 = vpop.permute.xlu0 %1104
  %1108 = vset.pattern.permute.xlu0 0
  %1109 = vperm.xlu0 %1108, %v1059
  %v1110 = vpop.permute.xlu0 %1109
  %1113 = vset.pattern.permute.xlu0 0
  %1114 = vperm.xlu0 %1113, %v1060
  %v1115 = vpop.permute.xlu0 %1114
  %1118 = vset.pattern.permute.xlu0 0
  %1119 = vperm.xlu0 %1118, %v1061
  %v1120 = vpop.permute.xlu0 %1119
  %1123 = vset.pattern.permute.xlu0 0
  %1124 = vperm.xlu0 %1123, %v1062
  %v1125 = vpop.permute.xlu0 %1124
  %1128 = vset.pattern.permute.xlu0 0
  %1129 = vperm.xlu0 %1128, %v1063
  %v1130 = vpop.permute.xlu0 %1129
  %1133 = vset.pattern.permute.xlu0 0
  %1134 = vperm.xlu0 %1133, %v1064
  %v1135 = vpop.permute.xlu0 %1134
  %1138 = vset.pattern.permute.xlu0 0
  %1139 = vperm.xlu0 %1138, %v1065
  %v1140 = vpop.permute.xlu0 %1139
  %1143 = vset.pattern.permute.xlu0 0
  %1144 = vperm.xlu0 %1143, %v1066
  %v1145 = vpop.permute.xlu0 %1144
  %v1163 = vunpack.c.l.b16 %v1003
  %v1164 = vunpack.c.l.b16 %v1004
  %v1165 = vunpack.c.l.b16 %v1005
  %v1166 = vunpack.c.l.b16 %v1006
  %v1167 = vunpack.c.l.b16 %v1007
  %v1168 = vunpack.c.l.b16 %v1008
  %v1169 = vunpack.c.l.b16 %v1009
  %v1170 = vunpack.c.l.b16 %v1010
  %v1171 = vunpack.c.l.b16 %v1011
  %v1172 = vunpack.c.l.b16 %v1012
  %v1173 = vunpack.c.l.b16 %v1013
  %v1174 = vunpack.c.l.b16 %v1014
  %v1175 = vunpack.c.l.b16 %v1015
  %v1176 = vunpack.c.l.b16 %v1016
  %v1177 = vunpack.c.l.b16 %v1017
  %v1178 = vunpack.c.l.b16 %v1018
  %v1179 = vpack.c.b16 %v1164, %v1163
  %v1180 = vpack.c.b16 %v1166, %v1165
  %v1181 = vpack.c.b16 %v1168, %v1167
  %v1182 = vpack.c.b16 %v1170, %v1169
  %v1183 = vpack.c.b16 %v1172, %v1171
  %v1184 = vpack.c.b16 %v1174, %v1173
  %v1185 = vpack.c.b16 %v1176, %v1175
  %v1186 = vpack.c.b16 %v1178, %v1177
  %1195 = vmatpush.bf16.msra.mxu0 %v1047
  %1196 = vmatpush.bf16.msra.mxu0 %v1043
  %1197 = vmatpush.bf16.msra.mxu0 %v1039
  %1198 = vmatpush.bf16.msra.mxu0 %v1035
  %1199 = vmatpush.bf16.msra.mxu0 %v1031
  %1200 = vmatpush.bf16.msra.mxu0 %v1027
  %1201 = vmatpush.bf16.msra.mxu0 %v1023
  %1202 = vmatpush.bf16.msra.mxu0 %v1019
  %1203 = vmatmul.bf16.gmra.mxu0 %v1179
  %v1204 = vpop.f32.mrf.mxu0
  %v1205 = vadd.f32 %v1070, %v1204
  %v1206 = vpop.f32.mrf.mxu0
  %v1207 = vadd.f32 %v1075, %v1206
  %1208 = vmatmul.bf16.gmra.mxu0 %v1180
  %v1209 = vpop.f32.mrf.mxu0
  %v1210 = vadd.f32 %v1080, %v1209
  %v1211 = vpop.f32.mrf.mxu0
  %v1212 = vadd.f32 %v1085, %v1211
  %1213 = vmatmul.bf16.gmra.mxu0 %v1181
  %v1214 = vpop.f32.mrf.mxu0
  %v1215 = vadd.f32 %v1090, %v1214
  %v1216 = vpop.f32.mrf.mxu0
  %v1217 = vadd.f32 %v1095, %v1216
  %1218 = vmatmul.bf16.gmra.mxu0 %v1182
  %v1219 = vpop.f32.mrf.mxu0
  %v1220 = vadd.f32 %v1100, %v1219
  %v1221 = vpop.f32.mrf.mxu0
  %v1222 = vadd.f32 %v1105, %v1221
  %1223 = vmatmul.bf16.gmra.mxu0 %v1183
  %v1224 = vpop.f32.mrf.mxu0
  %v1225 = vadd.f32 %v1110, %v1224
  %v1226 = vpop.f32.mrf.mxu0
  %v1227 = vadd.f32 %v1115, %v1226
  %1228 = vmatmul.bf16.gmra.mxu0 %v1184
  %v1229 = vpop.f32.mrf.mxu0
  %v1230 = vadd.f32 %v1120, %v1229
  %v1231 = vpop.f32.mrf.mxu0
  %v1232 = vadd.f32 %v1125, %v1231
  %1233 = vmatmul.bf16.gmra.mxu0 %v1185
  %v1234 = vpop.f32.mrf.mxu0
  %v1235 = vadd.f32 %v1130, %v1234
  %v1236 = vpop.f32.mrf.mxu0
  %v1237 = vadd.f32 %v1135, %v1236
  %1238 = vmatmul.bf16.gmra.mxu0 %v1186
  %v1239 = vpop.f32.mrf.mxu0
  %v1240 = vadd.f32 %v1140, %v1239
  %v1241 = vpop.f32.mrf.mxu0
  %v1242 = vadd.f32 %v1145, %v1241
  %1243 = vdwg.mxu0
  %1244 = vmatpush.bf16.msra.mxu0 %v1048
  %1245 = vmatpush.bf16.msra.mxu0 %v1044
  %1246 = vmatpush.bf16.msra.mxu0 %v1040
  %1247 = vmatpush.bf16.msra.mxu0 %v1036
  %1248 = vmatpush.bf16.msra.mxu0 %v1032
  %1249 = vmatpush.bf16.msra.mxu0 %v1028
  %1250 = vmatpush.bf16.msra.mxu0 %v1024
  %1251 = vmatpush.bf16.msra.mxu0 %v1020
  %1252 = vmatmul.bf16.gmra.mxu0 %v1179
  %v1253 = vpop.f32.mrf.mxu0
  %v1254 = vadd.f32 %v1070, %v1253
  %v1255 = vpop.f32.mrf.mxu0
  %v1256 = vadd.f32 %v1075, %v1255
  %1257 = vmatmul.bf16.gmra.mxu0 %v1180
  %v1258 = vpop.f32.mrf.mxu0
  %v1259 = vadd.f32 %v1080, %v1258
  %v1260 = vpop.f32.mrf.mxu0
  %v1261 = vadd.f32 %v1085, %v1260
  %1262 = vmatmul.bf16.gmra.mxu0 %v1181
  %v1263 = vpop.f32.mrf.mxu0
  %v1264 = vadd.f32 %v1090, %v1263
  %v1265 = vpop.f32.mrf.mxu0
  %v1266 = vadd.f32 %v1095, %v1265
  %1267 = vmatmul.bf16.gmra.mxu0 %v1182
  %v1268 = vpop.f32.mrf.mxu0
  %v1269 = vadd.f32 %v1100, %v1268
  %v1270 = vpop.f32.mrf.mxu0
  %v1271 = vadd.f32 %v1105, %v1270
  %1272 = vmatmul.bf16.gmra.mxu0 %v1183
  %v1273 = vpop.f32.mrf.mxu0
  %v1274 = vadd.f32 %v1110, %v1273
  %v1275 = vpop.f32.mrf.mxu0
  %v1276 = vadd.f32 %v1115, %v1275
  %1277 = vmatmul.bf16.gmra.mxu0 %v1184
  %v1278 = vpop.f32.mrf.mxu0
  %v1279 = vadd.f32 %v1120, %v1278
  %v1280 = vpop.f32.mrf.mxu0
  %v1281 = vadd.f32 %v1125, %v1280
  %1282 = vmatmul.bf16.gmra.mxu0 %v1185
  %v1283 = vpop.f32.mrf.mxu0
  %v1284 = vadd.f32 %v1130, %v1283
  %v1285 = vpop.f32.mrf.mxu0
  %v1286 = vadd.f32 %v1135, %v1285
  %1287 = vmatmul.bf16.gmra.mxu0 %v1186
  %v1288 = vpop.f32.mrf.mxu0
  %v1289 = vadd.f32 %v1140, %v1288
  %v1290 = vpop.f32.mrf.mxu0
  %v1291 = vadd.f32 %v1145, %v1290
  %1292 = vdwg.mxu0
  %1293 = vmatpush.bf16.msra.mxu0 %v1049
  %1294 = vmatpush.bf16.msra.mxu0 %v1045
  %1295 = vmatpush.bf16.msra.mxu0 %v1041
  %1296 = vmatpush.bf16.msra.mxu0 %v1037
  %1297 = vmatpush.bf16.msra.mxu0 %v1033
  %1298 = vmatpush.bf16.msra.mxu0 %v1029
  %1299 = vmatpush.bf16.msra.mxu0 %v1025
  %1300 = vmatpush.bf16.msra.mxu0 %v1021
  %1301 = vmatmul.bf16.gmra.mxu0 %v1179
  %v1302 = vpop.f32.mrf.mxu0
  %v1303 = vadd.f32 %v1070, %v1302
  %v1304 = vpop.f32.mrf.mxu0
  %v1305 = vadd.f32 %v1075, %v1304
  %1306 = vmatmul.bf16.gmra.mxu0 %v1180
  %v1307 = vpop.f32.mrf.mxu0
  %v1308 = vadd.f32 %v1080, %v1307
  %v1309 = vpop.f32.mrf.mxu0
  %v1310 = vadd.f32 %v1085, %v1309
  %1311 = vmatmul.bf16.gmra.mxu0 %v1181
  %v1312 = vpop.f32.mrf.mxu0
  %v1313 = vadd.f32 %v1090, %v1312
  %v1314 = vpop.f32.mrf.mxu0
  %v1315 = vadd.f32 %v1095, %v1314
  %1316 = vmatmul.bf16.gmra.mxu0 %v1182
  %v1317 = vpop.f32.mrf.mxu0
  %v1318 = vadd.f32 %v1100, %v1317
  %v1319 = vpop.f32.mrf.mxu0
  %v1320 = vadd.f32 %v1105, %v1319
  %1321 = vmatmul.bf16.gmra.mxu0 %v1183
  %v1322 = vpop.f32.mrf.mxu0
  %v1323 = vadd.f32 %v1110, %v1322
  %v1324 = vpop.f32.mrf.mxu0
  %v1325 = vadd.f32 %v1115, %v1324
  %1326 = vmatmul.bf16.gmra.mxu0 %v1184
  %v1327 = vpop.f32.mrf.mxu0
  %v1328 = vadd.f32 %v1120, %v1327
  %v1329 = vpop.f32.mrf.mxu0
  %v1330 = vadd.f32 %v1125, %v1329
  %1331 = vmatmul.bf16.gmra.mxu0 %v1185
  %v1332 = vpop.f32.mrf.mxu0
  %v1333 = vadd.f32 %v1130, %v1332
  %v1334 = vpop.f32.mrf.mxu0
  %v1335 = vadd.f32 %v1135, %v1334
  %1336 = vmatmul.bf16.gmra.mxu0 %v1186
  %v1337 = vpop.f32.mrf.mxu0
  %v1338 = vadd.f32 %v1140, %v1337
  %v1339 = vpop.f32.mrf.mxu0
  %v1340 = vadd.f32 %v1145, %v1339
  %1341 = vdwg.mxu0
  %1342 = vmatpush.bf16.msra.mxu0 %v1050
  %1343 = vmatpush.bf16.msra.mxu0 %v1046
  %1344 = vmatpush.bf16.msra.mxu0 %v1042
  %1345 = vmatpush.bf16.msra.mxu0 %v1038
  %1346 = vmatpush.bf16.msra.mxu0 %v1034
  %1347 = vmatpush.bf16.msra.mxu0 %v1030
  %1348 = vmatpush.bf16.msra.mxu0 %v1026
  %1349 = vmatpush.bf16.msra.mxu0 %v1022
  %1350 = vmatmul.bf16.gmra.mxu0 %v1179
  %v1351 = vpop.f32.mrf.mxu0
  %v1352 = vadd.f32 %v1070, %v1351
  %v1353 = vpop.f32.mrf.mxu0
  %v1354 = vadd.f32 %v1075, %v1353
  %1355 = vmatmul.bf16.gmra.mxu0 %v1180
  %v1356 = vpop.f32.mrf.mxu0
  %v1357 = vadd.f32 %v1080, %v1356
  %v1358 = vpop.f32.mrf.mxu0
  %v1359 = vadd.f32 %v1085, %v1358
  %1360 = vmatmul.bf16.gmra.mxu0 %v1181
  %v1361 = vpop.f32.mrf.mxu0
  %v1362 = vadd.f32 %v1090, %v1361
  %v1363 = vpop.f32.mrf.mxu0
  %v1364 = vadd.f32 %v1095, %v1363
  %1365 = vmatmul.bf16.gmra.mxu0 %v1182
  %v1366 = vpop.f32.mrf.mxu0
  %v1367 = vadd.f32 %v1100, %v1366
  %v1368 = vpop.f32.mrf.mxu0
  %v1369 = vadd.f32 %v1105, %v1368
  %1370 = vmatmul.bf16.gmra.mxu0 %v1183
  %v1371 = vpop.f32.mrf.mxu0
  %v1372 = vadd.f32 %v1110, %v1371
  %v1373 = vpop.f32.mrf.mxu0
  %v1374 = vadd.f32 %v1115, %v1373
  %1375 = vmatmul.bf16.gmra.mxu0 %v1184
  %v1376 = vpop.f32.mrf.mxu0
  %v1377 = vadd.f32 %v1120, %v1376
  %v1378 = vpop.f32.mrf.mxu0
  %v1379 = vadd.f32 %v1125, %v1378
  %1380 = vmatmul.bf16.gmra.mxu0 %v1185
  %v1381 = vpop.f32.mrf.mxu0
  %v1382 = vadd.f32 %v1130, %v1381
  %v1383 = vpop.f32.mrf.mxu0
  %v1384 = vadd.f32 %v1135, %v1383
  %1385 = vmatmul.bf16.gmra.mxu0 %v1186
  %v1386 = vpop.f32.mrf.mxu0
  %v1387 = vadd.f32 %v1140, %v1386
  %v1388 = vpop.f32.mrf.mxu0
  %v1389 = vadd.f32 %v1145, %v1388
  %1390 = vdwg.mxu0
  %v1391 = vmul.f32 %v1205, 0.01
  %v1392 = vmul.f32 %v1254, 0.01
  %v1393 = vmul.f32 %v1303, 0.01
  %v1394 = vmul.f32 %v1352, 0.01
  %v1395 = vmul.f32 %v1207, 0.01
  %v1396 = vmul.f32 %v1256, 0.01
  %v1397 = vmul.f32 %v1305, 0.01
  %v1398 = vmul.f32 %v1354, 0.01
  %v1399 = vmul.f32 %v1210, 0.01
  %v1400 = vmul.f32 %v1259, 0.01
  %v1401 = vmul.f32 %v1308, 0.01
  %v1402 = vmul.f32 %v1357, 0.01
  %v1403 = vmul.f32 %v1212, 0.01
  %v1404 = vmul.f32 %v1261, 0.01
  %v1405 = vmul.f32 %v1310, 0.01
  %v1406 = vmul.f32 %v1359, 0.01
  %v1407 = vmul.f32 %v1215, 0.01
  %v1408 = vmul.f32 %v1264, 0.01
  %v1409 = vmul.f32 %v1313, 0.01
  %v1410 = vmul.f32 %v1362, 0.01
  %v1411 = vmul.f32 %v1217, 0.01
  %v1412 = vmul.f32 %v1266, 0.01
  %v1413 = vmul.f32 %v1315, 0.01
  %v1414 = vmul.f32 %v1364, 0.01
  %v1415 = vmul.f32 %v1220, 0.01
  %v1416 = vmul.f32 %v1269, 0.01
  %v1417 = vmul.f32 %v1318, 0.01
  %v1418 = vmul.f32 %v1367, 0.01
  %v1419 = vmul.f32 %v1222, 0.01
  %v1420 = vmul.f32 %v1271, 0.01
  %v1421 = vmul.f32 %v1320, 0.01
  %v1422 = vmul.f32 %v1369, 0.01
  %v1423 = vmul.f32 %v1225, 0.01
  %v1424 = vmul.f32 %v1274, 0.01
  %v1425 = vmul.f32 %v1323, 0.01
  %v1426 = vmul.f32 %v1372, 0.01
  %v1427 = vmul.f32 %v1227, 0.01
  %v1428 = vmul.f32 %v1276, 0.01
  %v1429 = vmul.f32 %v1325, 0.01
  %v1430 = vmul.f32 %v1374, 0.01
  %v1431 = vmul.f32 %v1230, 0.01
  %v1432 = vmul.f32 %v1279, 0.01
  %v1433 = vmul.f32 %v1328, 0.01
  %v1434 = vmul.f32 %v1377, 0.01
  %v1435 = vmul.f32 %v1232, 0.01
  %v1436 = vmul.f32 %v1281, 0.01
  %v1437 = vmul.f32 %v1330, 0.01
  %v1438 = vmul.f32 %v1379, 0.01
  %v1439 = vmul.f32 %v1235, 0.01
  %v1440 = vmul.f32 %v1284, 0.01
  %v1441 = vmul.f32 %v1333, 0.01
  %v1442 = vmul.f32 %v1382, 0.01
  %v1443 = vmul.f32 %v1237, 0.01
  %v1444 = vmul.f32 %v1286, 0.01
  %v1445 = vmul.f32 %v1335, 0.01
  %v1446 = vmul.f32 %v1384, 0.01
  %v1447 = vmul.f32 %v1240, 0.01
  %v1448 = vmul.f32 %v1289, 0.01
  %v1449 = vmul.f32 %v1338, 0.01
  %v1450 = vmul.f32 %v1387, 0.01
  %v1451 = vmul.f32 %v1242, 0.01
  %v1452 = vmul.f32 %v1291, 0.01
  %v1453 = vmul.f32 %v1340, 0.01
  %v1454 = vmul.f32 %v1389, 0.01
  %v1455 = vmax.f32 %v1205, %v1391
  %v1456 = vmax.f32 %v1254, %v1392
  %v1457 = vmax.f32 %v1303, %v1393
  %v1458 = vmax.f32 %v1352, %v1394
  %v1459 = vmax.f32 %v1207, %v1395
  %v1460 = vmax.f32 %v1256, %v1396
  %v1461 = vmax.f32 %v1305, %v1397
  %v1462 = vmax.f32 %v1354, %v1398
  %v1463 = vmax.f32 %v1210, %v1399
  %v1464 = vmax.f32 %v1259, %v1400
  %v1465 = vmax.f32 %v1308, %v1401
  %v1466 = vmax.f32 %v1357, %v1402
  %v1467 = vmax.f32 %v1212, %v1403
  %v1468 = vmax.f32 %v1261, %v1404
  %v1469 = vmax.f32 %v1310, %v1405
  %v1470 = vmax.f32 %v1359, %v1406
  %v1471 = vmax.f32 %v1215, %v1407
  %v1472 = vmax.f32 %v1264, %v1408
  %v1473 = vmax.f32 %v1313, %v1409
  %v1474 = vmax.f32 %v1362, %v1410
  %v1475 = vmax.f32 %v1217, %v1411
  %v1476 = vmax.f32 %v1266, %v1412
  %v1477 = vmax.f32 %v1315, %v1413
  %v1478 = vmax.f32 %v1364, %v1414
  %v1479 = vmax.f32 %v1220, %v1415
  %v1480 = vmax.f32 %v1269, %v1416
  %v1481 = vmax.f32 %v1318, %v1417
  %v1482 = vmax.f32 %v1367, %v1418
  %v1483 = vmax.f32 %v1222, %v1419
  %v1484 = vmax.f32 %v1271, %v1420
  %v1485 = vmax.f32 %v1320, %v1421
  %v1486 = vmax.f32 %v1369, %v1422
  %v1487 = vmax.f32 %v1225, %v1423
  %v1488 = vmax.f32 %v1274, %v1424
  %v1489 = vmax.f32 %v1323, %v1425
  %v1490 = vmax.f32 %v1372, %v1426
  %v1491 = vmax.f32 %v1227, %v1427
  %v1492 = vmax.f32 %v1276, %v1428
  %v1493 = vmax.f32 %v1325, %v1429
  %v1494 = vmax.f32 %v1374, %v1430
  %v1495 = vmax.f32 %v1230, %v1431
  %v1496 = vmax.f32 %v1279, %v1432
  %v1497 = vmax.f32 %v1328, %v1433
  %v1498 = vmax.f32 %v1377, %v1434
  %v1499 = vmax.f32 %v1232, %v1435
  %v1500 = vmax.f32 %v1281, %v1436
  %v1501 = vmax.f32 %v1330, %v1437
  %v1502 = vmax.f32 %v1379, %v1438
  %v1503 = vmax.f32 %v1235, %v1439
  %v1504 = vmax.f32 %v1284, %v1440
  %v1505 = vmax.f32 %v1333, %v1441
  %v1506 = vmax.f32 %v1382, %v1442
  %v1507 = vmax.f32 %v1237, %v1443
  %v1508 = vmax.f32 %v1286, %v1444
  %v1509 = vmax.f32 %v1335, %v1445
  %v1510 = vmax.f32 %v1384, %v1446
  %v1511 = vmax.f32 %v1240, %v1447
  %v1512 = vmax.f32 %v1289, %v1448
  %v1513 = vmax.f32 %v1338, %v1449
  %v1514 = vmax.f32 %v1387, %v1450
  %v1515 = vmax.f32 %v1242, %v1451
  %v1516 = vmax.f32 %v1291, %v1452
  %v1517 = vmax.f32 %v1340, %v1453
  %v1518 = vmax.f32 %v1389, %v1454
  %v1519 = vld [vmem:[%s6] sm:$0x1]
  %v1520 = vpack.c.bf16 %v1459, %v1455
  %v1521 = vpack.c.bf16 %v1460, %v1456
  %v1522 = vpack.c.bf16 %v1461, %v1457
  %v1523 = vpack.c.bf16 %v1462, %v1458
  %v1524 = vpack.c.bf16 %v1467, %v1463
  %v1525 = vpack.c.bf16 %v1468, %v1464
  %v1526 = vpack.c.bf16 %v1469, %v1465
  %v1527 = vpack.c.bf16 %v1470, %v1466
  %v1528 = vpack.c.bf16 %v1475, %v1471
  %v1529 = vpack.c.bf16 %v1476, %v1472
  %v1530 = vpack.c.bf16 %v1477, %v1473
  %v1531 = vpack.c.bf16 %v1478, %v1474
  %v1532 = vpack.c.bf16 %v1483, %v1479
  %v1533 = vpack.c.bf16 %v1484, %v1480
  %v1534 = vpack.c.bf16 %v1485, %v1481
  %v1535 = vpack.c.bf16 %v1486, %v1482
  %v1536 = vpack.c.bf16 %v1491, %v1487
  %v1537 = vpack.c.bf16 %v1492, %v1488
  %v1538 = vpack.c.bf16 %v1493, %v1489
  %v1539 = vpack.c.bf16 %v1494, %v1490
  %v1540 = vpack.c.bf16 %v1499, %v1495
  %v1541 = vpack.c.bf16 %v1500, %v1496
  %v1542 = vpack.c.bf16 %v1501, %v1497
  %v1543 = vpack.c.bf16 %v1502, %v1498
  %v1544 = vpack.c.bf16 %v1507, %v1503
  %v1545 = vpack.c.bf16 %v1508, %v1504
  %v1546 = vpack.c.bf16 %v1509, %v1505
  %v1547 = vpack.c.bf16 %v1510, %v1506
  %v1548 = vpack.c.bf16 %v1515, %v1511
  %v1549 = vpack.c.bf16 %v1516, %v1512
  %v1550 = vpack.c.bf16 %v1517, %v1513
  %v1551 = vpack.c.bf16 %v1518, %v1514
  %s1552 = sld [smem:[#allocation2]]
  %v1553 = vstv %s1552
  %1554 = vmatpush.bf16.msra.mxu0 %v1548
  %1555 = vmatpush.bf16.msra.mxu0 %v1544
  %1556 = vmatpush.bf16.msra.mxu0 %v1540
  %1557 = vmatpush.bf16.msra.mxu0 %v1536
  %1558 = vmatpush.bf16.msra.mxu0 %v1532
  %1559 = vmatpush.bf16.msra.mxu0 %v1528
  %1560 = vmatpush.bf16.msra.mxu0 %v1524
  %1561 = vmatpush.bf16.msra.mxu0 %v1520
  %1562 = vmatmul.bf16.gmra.mxu0 %v1519
  %v1563 = vpop.f32.mrf.mxu0
  %v1564 = vadd.f32 %v1553, %v1563
  %v1565 = vpop.f32.mrf.mxu0
  %1566 = vdwg.mxu0
  %1567 = vmatpush.bf16.msra.mxu0 %v1549
  %1568 = vmatpush.bf16.msra.mxu0 %v1545
  %1569 = vmatpush.bf16.msra.mxu0 %v1541
  %1570 = vmatpush.bf16.msra.mxu0 %v1537
  %1571 = vmatpush.bf16.msra.mxu0 %v1533
  %1572 = vmatpush.bf16.msra.mxu0 %v1529
  %1573 = vmatpush.bf16.msra.mxu0 %v1525
  %1574 = vmatpush.bf16.msra.mxu0 %v1521
  %1575 = vmatmul.bf16.gmra.mxu0 %v1519
  %v1576 = vpop.f32.mrf.mxu0
  %v1577 = vadd.f32 %v1553, %v1576
  %v1578 = vpop.f32.mrf.mxu0
  %1579 = vdwg.mxu0
  %1580 = vmatpush.bf16.msra.mxu0 %v1550
  %1581 = vmatpush.bf16.msra.mxu0 %v1546
  %1582 = vmatpush.bf16.msra.mxu0 %v1542
  %1583 = vmatpush.bf16.msra.mxu0 %v1538
  %1584 = vmatpush.bf16.msra.mxu0 %v1534
  %1585 = vmatpush.bf16.msra.mxu0 %v1530
  %1586 = vmatpush.bf16.msra.mxu0 %v1526
  %1587 = vmatpush.bf16.msra.mxu0 %v1522
  %1588 = vmatmul.bf16.gmra.mxu0 %v1519
  %v1589 = vpop.f32.mrf.mxu0
  %v1590 = vadd.f32 %v1553, %v1589
  %v1591 = vpop.f32.mrf.mxu0
  %1592 = vdwg.mxu0
  %1593 = vmatpush.bf16.msra.mxu0 %v1551
  %1594 = vmatpush.bf16.msra.mxu0 %v1547
  %1595 = vmatpush.bf16.msra.mxu0 %v1543
  %1596 = vmatpush.bf16.msra.mxu0 %v1539
  %1597 = vmatpush.bf16.msra.mxu0 %v1535
  %1598 = vmatpush.bf16.msra.mxu0 %v1531
  %1599 = vmatpush.bf16.msra.mxu0 %v1527
  %1600 = vmatpush.bf16.msra.mxu0 %v1523
  %1601 = vmatmul.bf16.gmra.mxu0 %v1519
  %v1602 = vpop.f32.mrf.mxu0
  %v1603 = vadd.f32 %v1553, %v1602
  %v1604 = vpop.f32.mrf.mxu0
  %1605 = vdwg.mxu0
  %v1610 = vrot.slane %v1577, 7
  %v1611 = vrot.slane %v1590, 6
  %v1612 = vrot.slane %v1603, 5
  %v1613 = vsel %vm148, %v1564, %v1610
  %vm1614 = vcmask 1042434
  %v1615 = vsel %vm1614, %v1611, %v1612
  %vm1616 = vcmask 1041408
  %v1617 = vsel %vm1616, %v1613, %v1615
  %v1619 = vlaneseq
  %vm1620 = vcmp.ge.s32.totalorder %v1619, 0
  %vm1621 = vcmp.lt.s32.totalorder %v1619, 512
  %vm1622 = vmand %vm1620, %vm1621
  %1623 = vst.msk [vmem:[%s8] sm:$0xf] %vm1622, %v1617
  // Predicated region
  $region34: #{dnn_forward.1} parent=0 // pred_check
    _
  $region35: #{dnn_forward.1} parent=0 // pred_check_branch
    %1625 = sbr.rel (0) target = $region37
  $region36: #{dnn_forward.1} parent=0 // pred_region
    _
  $region37: #{dnn_forward.1} parent=0 // pred_fallthru
    _
  // Predicated region
  $region38: #{dnn_forward.1} parent=0 // pred_check
    _
  $region39: #{dnn_forward.1} parent=0 // pred_check_branch
    %1627 = sbr.rel (0) target = $region41
  $region40: #{dnn_forward.1} parent=0 // pred_region
    _
  $region41: #{dnn_forward.1} parent=0 // pred_fallthru
    _

</llo_original>
